<compile_context>
chip_gen: v7x
topology: tpu7x:2x2x1
jax: 0.10.0
libtpu: 0.0.40
codegen_flags: <defaults>
</compile_context>

<pallas_src>
import jax
import jax.numpy as jnp
from jax.experimental import pallas as pl
from jax.experimental.pallas import tpu as pltpu
from functools import partial


# ----------------------------------------------------------------------------
# Fused kernel: stacked LSTM layers + final Linear, whole problem in VMEM.
# ----------------------------------------------------------------------------
def fused_lstm_kernel(x_ref, *rest, num_layer, hidden_size):
    """Ref order after x_ref: per layer (w_ih_t, w_hh_t, b), then w_fc_t, b_fc,
    then out_ref (output), then seq_scr (VMEM scratch, (S, B, H))."""
    H = hidden_size
    S, B, _ = x_ref.shape
    layer_refs = rest[:3 * num_layer]
    wfc_ref, bfc_ref, out_ref, seq_scr = rest[3 * num_layer:]

    layer_in = x_ref[...]                                    # (S, B, in_dim)
    for layer in range(num_layer):
        wih_ref, whh_ref, b_ref = layer_refs[3 * layer:3 * layer + 3]
        in_dim = layer_in.shape[-1]
        whh = whh_ref[...]                                   # (H, 4H) resident

        # Hoisted input projection for ALL timesteps: one MXU call per layer.
        gx = (jnp.dot(layer_in.reshape(S * B, in_dim), wih_ref[...],
                      preferred_element_type=jnp.float32)
              + b_ref[...]).reshape(S, B, 4 * H)             # (S, B, 4H)

        h = jnp.zeros((B, H), jnp.float32)
        c = jnp.zeros((B, H), jnp.float32)
        # Fully-unrolled time recurrence (S is small & static): only the
        # recurrent matmul and gate nonlinearities remain per step.
        for t in range(S):
            gates = gx[t] + jnp.dot(h, whh,
                                    preferred_element_type=jnp.float32)
            i_g = jax.nn.sigmoid(gates[:, 0 * H:1 * H])
            f_g = jax.nn.sigmoid(gates[:, 1 * H:2 * H])
            g_g = jnp.tanh(gates[:, 2 * H:3 * H])
            o_g = jax.nn.sigmoid(gates[:, 3 * H:4 * H])
            c = f_g * c + i_g * g_g
            h = o_g * jnp.tanh(c)
            seq_scr[t] = h                                   # layer output (VMEM)
        layer_in = seq_scr[...]                              # (S, B, H)

    # Fused final Linear over all S*B rows; single lane-dense-as-possible
    # writeback to HBM (one store for the whole output).
    out_ref[...] = (jnp.dot(layer_in.reshape(S * B, H), wfc_ref[...],
                            preferred_element_type=jnp.float32)
                    + bfc_ref[...])


def lstm_module_forward(params, x, hidden_size):
    """x: (S, B, input_size) f32 -> (S*B, output_size) f32."""
    S, B, _ = x.shape
    H = hidden_size
    num_layer = len(params["lstm"])
    O = params["linear"]["w_t"].shape[1]

    inputs = [x]
    for lp in params["lstm"]:
        inputs += [lp["w_ih_t"], lp["w_hh_t"], lp["b"]]
    inputs += [params["linear"]["w_t"], params["linear"]["b"]]

    kernel = partial(fused_lstm_kernel, num_layer=num_layer, hidden_size=H)
    return pl.pallas_call(
        kernel,
        out_shape=jax.ShapeDtypeStruct((S * B, O), jnp.float32),
        # Whole arrays resident in VMEM (no grid, no per-step DMA).
        in_specs=[pl.BlockSpec(memory_space=pltpu.MemorySpace.VMEM)
                  for _ in inputs],
        out_specs=pl.BlockSpec(memory_space=pltpu.MemorySpace.VMEM),
        scratch_shapes=[pltpu.VMEM((S, B, H), jnp.float32)],  # inter-layer seq
    )(*inputs)


# ----------------------------------------------------------------------------
# Parameters (PyTorch-style init) and a pure-JAX reference for verification.
# ----------------------------------------------------------------------------
def init_params(key, input_size, hidden_size, output_size, num_layer):
    """PyTorch-style init: U(-k, k) with k = 1/sqrt(hidden_size)."""
    k = 1.0 / jnp.sqrt(jnp.float32(hidden_size))
    params = {"lstm": [], "linear": {}}
    for layer in range(num_layer):
        in_dim = input_size if layer == 0 else hidden_size
        key, k1, k2, k3, k4 = jax.random.split(key, 5)
        w_ih = jax.random.uniform(k1, (4 * hidden_size, in_dim),
                                  jnp.float32, -k, k)
        w_hh = jax.random.uniform(k2, (4 * hidden_size, hidden_size),
                                  jnp.float32, -k, k)
        b_ih = jax.random.uniform(k3, (4 * hidden_size,), jnp.float32, -k, k)
        b_hh = jax.random.uniform(k4, (4 * hidden_size,), jnp.float32, -k, k)
        params["lstm"].append({
            "w_ih_t": w_ih.T,                      # (in_dim, 4H)
            "w_hh_t": w_hh.T,                      # (H, 4H)
            "b": (b_ih + b_hh)[None, :],           # (1, 4H)
        })
    key, k1, k2 = jax.random.split(key, 3)
    w_fc = jax.random.uniform(k1, (output_size, hidden_size),
                              jnp.float32, -k, k)
    b_fc = jax.random.uniform(k2, (output_size,), jnp.float32, -k, k)
    params["linear"] = {"w_t": w_fc.T, "b": b_fc[None, :]}
    return params


def lstm_module_reference(params, x, hidden_size):
    """Pure-JAX reference of the same forward pass (for correctness check)."""
    S, B, _ = x.shape
    H = hidden_size
    hp = jax.lax.Precision.HIGHEST
    layer_in = x
    for lp in params["lstm"]:
        h = jnp.zeros((B, H), jnp.float32)
        c = jnp.zeros((B, H), jnp.float32)
        outs = []
        for t in range(S):
            gates = (jnp.dot(layer_in[t], lp["w_ih_t"], precision=hp)
                     + jnp.dot(h, lp["w_hh_t"], precision=hp) + lp["b"])
            i_g = jax.nn.sigmoid(gates[:, 0 * H:1 * H])
            f_g = jax.nn.sigmoid(gates[:, 1 * H:2 * H])
            g_g = jnp.tanh(gates[:, 2 * H:3 * H])
            o_g = jax.nn.sigmoid(gates[:, 3 * H:4 * H])
            c = f_g * c + i_g * g_g
            h = o_g * jnp.tanh(c)
            outs.append(h)
        layer_in = jnp.stack(outs, axis=0)
    y = (jnp.dot(layer_in.reshape(S * B, H), params["linear"]["w_t"],
                 precision=hp) + params["linear"]["b"])
    return y


if __name__ == "__main__":
    INPUT_SIZE = 16
    HIDDEN_SIZE = 32
    OUTPUT_SIZE = 8
    NUM_LAYER = 2
    SEQ = 8
    BATCH = 2

    key = jax.random.PRNGKey(0)
    key, pkey, xkey = jax.random.split(key, 3)

    params = init_params(pkey, INPUT_SIZE, HIDDEN_SIZE, OUTPUT_SIZE, NUM_LAYER)
    x = jax.random.normal(xkey, (SEQ, BATCH, INPUT_SIZE), jnp.float32)

    out = lstm_module_forward(params, x, HIDDEN_SIZE)
    out = jax.block_until_ready(out)

    assert out.shape == (SEQ * BATCH, OUTPUT_SIZE), out.shape
    assert out.dtype == jnp.float32

    ref = lstm_module_reference(params, x, HIDDEN_SIZE)
    max_err = float(jnp.max(jnp.abs(out - ref)))
    assert max_err < 5e-2, f"max abs err vs reference: {max_err}"

    print("KERNEL_OK")
</pallas_src>

<mosaic_0001>
module attributes {stable_mosaic.version = 11 : i64} {
  func.func @fused_lstm_kernel(%arg0: memref<8x2x16xf32, #tpu.memory_space<vmem>>, %arg1: memref<16x128xf32, #tpu.memory_space<vmem>>, %arg2: memref<32x128xf32, #tpu.memory_space<vmem>>, %arg3: memref<1x128xf32, #tpu.memory_space<vmem>>, %arg4: memref<32x128xf32, #tpu.memory_space<vmem>>, %arg5: memref<32x128xf32, #tpu.memory_space<vmem>>, %arg6: memref<1x128xf32, #tpu.memory_space<vmem>>, %arg7: memref<32x8xf32, #tpu.memory_space<vmem>>, %arg8: memref<1x8xf32, #tpu.memory_space<vmem>>, %arg9: memref<16x8xf32, #tpu.memory_space<vmem>>, %arg10: memref<8x2x32xf32, #tpu.memory_space<vmem>>) attributes {dimension_semantics = [], scalar_prefetch = 0 : i64, scratch_operands = 1 : i64, tpu.core_type = #tpu.core_type<tc>} {
    %c0 = arith.constant 0 : index
    %c0_0 = arith.constant 0 : index
    %c0_1 = arith.constant 0 : index
    %0 = vector.load %arg0[%c0, %c0_0, %c0_1] : memref<8x2x16xf32, #tpu.memory_space<vmem>>, vector<8x2x16xf32>
    %c0_2 = arith.constant 0 : index
    %c0_3 = arith.constant 0 : index
    %1 = vector.load %arg2[%c0_2, %c0_3] : memref<32x128xf32, #tpu.memory_space<vmem>>, vector<32x128xf32>
    %2 = vector.shape_cast %0 : vector<8x2x16xf32> to vector<16x16xf32>
    %c0_4 = arith.constant 0 : index
    %c0_5 = arith.constant 0 : index
    %3 = vector.load %arg1[%c0_4, %c0_5] : memref<16x128xf32, #tpu.memory_space<vmem>>, vector<16x128xf32>
    %cst = arith.constant dense<0.000000e+00> : vector<16x128xf32>
    %4 = tpu.matmul %2, %3, %cst {dimension_numbers = #tpu.dot_dimension_numbers<[1], [0], [0], [1], [0, 0, 1, 1], [], []>} : vector<16x16xf32>, vector<16x128xf32>, vector<16x128xf32> -> vector<16x128xf32>
    %c0_6 = arith.constant 0 : index
    %c0_7 = arith.constant 0 : index
    %5 = vector.load %arg3[%c0_6, %c0_7] : memref<1x128xf32, #tpu.memory_space<vmem>>, vector<1x128xf32>
    %6 = vector.broadcast %5 : vector<1x128xf32> to vector<16x128xf32>
    %7 = arith.addf %4, %6 : vector<16x128xf32>
    %8 = vector.shape_cast %7 : vector<16x128xf32> to vector<8x2x128xf32>
    %cst_8 = arith.constant 0.000000e+00 : f32
    %9 = vector.broadcast %cst_8 : f32 to vector<2x32xf32>
    %cst_9 = arith.constant 0.000000e+00 : f32
    %10 = vector.broadcast %cst_9 : f32 to vector<2x32xf32>
    %11 = vector.extract_strided_slice %8 {offsets = [0, 0, 0], sizes = [1, 2, 128], strides = [1, 1, 1]} : vector<8x2x128xf32> to vector<1x2x128xf32>
    %12 = vector.shape_cast %11 : vector<1x2x128xf32> to vector<2x128xf32>
    %cst_10 = arith.constant dense<0.000000e+00> : vector<2x128xf32>
    %13 = tpu.matmul %9, %1, %cst_10 {dimension_numbers = #tpu.dot_dimension_numbers<[1], [0], [0], [1], [0, 0, 1, 1], [], []>} : vector<2x32xf32>, vector<32x128xf32>, vector<2x128xf32> -> vector<2x128xf32>
    %14 = arith.addf %12, %13 : vector<2x128xf32>
    %15 = vector.extract_strided_slice %14 {offsets = [0, 0], sizes = [2, 32], strides = [1, 1]} : vector<2x128xf32> to vector<2x32xf32>
    %16 = arith.negf %15 : vector<2x32xf32>
    %17 = math.exp %16 : vector<2x32xf32>
    %cst_11 = arith.constant 1.000000e+00 : f32
    %18 = vector.broadcast %cst_11 : f32 to vector<2x32xf32>
    %19 = arith.addf %18, %17 : vector<2x32xf32>
    %20 = arith.divf %18, %19 : vector<2x32xf32>
    %21 = vector.extract_strided_slice %14 {offsets = [0, 32], sizes = [2, 32], strides = [1, 1]} : vector<2x128xf32> to vector<2x32xf32>
    %22 = arith.negf %21 : vector<2x32xf32>
    %23 = math.exp %22 : vector<2x32xf32>
    %cst_12 = arith.constant 1.000000e+00 : f32
    %24 = vector.broadcast %cst_12 : f32 to vector<2x32xf32>
    %25 = arith.addf %24, %23 : vector<2x32xf32>
    %26 = arith.divf %24, %25 : vector<2x32xf32>
    %27 = vector.extract_strided_slice %14 {offsets = [0, 64], sizes = [2, 32], strides = [1, 1]} : vector<2x128xf32> to vector<2x32xf32>
    %28 = math.tanh %27 : vector<2x32xf32>
    %29 = vector.extract_strided_slice %14 {offsets = [0, 96], sizes = [2, 32], strides = [1, 1]} : vector<2x128xf32> to vector<2x32xf32>
    %30 = arith.negf %29 : vector<2x32xf32>
    %31 = math.exp %30 : vector<2x32xf32>
    %cst_13 = arith.constant 1.000000e+00 : f32
    %32 = vector.broadcast %cst_13 : f32 to vector<2x32xf32>
    %33 = arith.addf %32, %31 : vector<2x32xf32>
    %34 = arith.divf %32, %33 : vector<2x32xf32>
    %35 = arith.mulf %26, %10 : vector<2x32xf32>
    %36 = arith.mulf %20, %28 : vector<2x32xf32>
    %37 = arith.addf %35, %36 : vector<2x32xf32>
    %38 = math.tanh %37 : vector<2x32xf32>
    %39 = arith.mulf %34, %38 : vector<2x32xf32>
    %c0_14 = arith.constant 0 : index
    %c0_15 = arith.constant 0 : index
    %c0_16 = arith.constant 0 : index
    %40 = vector.load %arg10[%c0_14, %c0_15, %c0_16] : memref<8x2x32xf32, #tpu.memory_space<vmem>>, vector<1x2x32xf32>
    %41 = vector.shape_cast %40 : vector<1x2x32xf32> to vector<2x32xf32>
    %42 = vector.shape_cast %39 : vector<2x32xf32> to vector<1x2x32xf32>
    tpu.vector_store %arg10[%c0_14, %c0_15, %c0_16], %42 {strides = array<i32>} : memref<8x2x32xf32, #tpu.memory_space<vmem>>, vector<1x2x32xf32>,
    %43 = vector.extract_strided_slice %8 {offsets = [1, 0, 0], sizes = [1, 2, 128], strides = [1, 1, 1]} : vector<8x2x128xf32> to vector<1x2x128xf32>
    %44 = vector.shape_cast %43 : vector<1x2x128xf32> to vector<2x128xf32>
    %cst_17 = arith.constant dense<0.000000e+00> : vector<2x128xf32>
    %45 = tpu.matmul %39, %1, %cst_17 {dimension_numbers = #tpu.dot_dimension_numbers<[1], [0], [0], [1], [0, 0, 1, 1], [], []>} : vector<2x32xf32>, vector<32x128xf32>, vector<2x128xf32> -> vector<2x128xf32>
    %46 = arith.addf %44, %45 : vector<2x128xf32>
    %47 = vector.extract_strided_slice %46 {offsets = [0, 0], sizes = [2, 32], strides = [1, 1]} : vector<2x128xf32> to vector<2x32xf32>
    %48 = arith.negf %47 : vector<2x32xf32>
    %49 = math.exp %48 : vector<2x32xf32>
    %cst_18 = arith.constant 1.000000e+00 : f32
    %50 = vector.broadcast %cst_18 : f32 to vector<2x32xf32>
    %51 = arith.addf %50, %49 : vector<2x32xf32>
    %52 = arith.divf %50, %51 : vector<2x32xf32>
    %53 = vector.extract_strided_slice %46 {offsets = [0, 32], sizes = [2, 32], strides = [1, 1]} : vector<2x128xf32> to vector<2x32xf32>
    %54 = arith.negf %53 : vector<2x32xf32>
    %55 = math.exp %54 : vector<2x32xf32>
    %cst_19 = arith.constant 1.000000e+00 : f32
    %56 = vector.broadcast %cst_19 : f32 to vector<2x32xf32>
    %57 = arith.addf %56, %55 : vector<2x32xf32>
    %58 = arith.divf %56, %57 : vector<2x32xf32>
    %59 = vector.extract_strided_slice %46 {offsets = [0, 64], sizes = [2, 32], strides = [1, 1]} : vector<2x128xf32> to vector<2x32xf32>
    %60 = math.tanh %59 : vector<2x32xf32>
    %61 = vector.extract_strided_slice %46 {offsets = [0, 96], sizes = [2, 32], strides = [1, 1]} : vector<2x128xf32> to vector<2x32xf32>
    %62 = arith.negf %61 : vector<2x32xf32>
    %63 = math.exp %62 : vector<2x32xf32>
    %cst_20 = arith.constant 1.000000e+00 : f32
    %64 = vector.broadcast %cst_20 : f32 to vector<2x32xf32>
    %65 = arith.addf %64, %63 : vector<2x32xf32>
    %66 = arith.divf %64, %65 : vector<2x32xf32>
    %67 = arith.mulf %58, %37 : vector<2x32xf32>
    %68 = arith.mulf %52, %60 : vector<2x32xf32>
    %69 = arith.addf %67, %68 : vector<2x32xf32>
    %70 = math.tanh %69 : vector<2x32xf32>
    %71 = arith.mulf %66, %70 : vector<2x32xf32>
    %c1 = arith.constant 1 : index
    %c0_21 = arith.constant 0 : index
    %c0_22 = arith.constant 0 : index
    %72 = vector.load %arg10[%c1, %c0_21, %c0_22] : memref<8x2x32xf32, #tpu.memory_space<vmem>>, vector<1x2x32xf32>
    %73 = vector.shape_cast %72 : vector<1x2x32xf32> to vector<2x32xf32>
    %74 = vector.shape_cast %71 : vector<2x32xf32> to vector<1x2x32xf32>
    tpu.vector_store %arg10[%c1, %c0_21, %c0_22], %74 {strides = array<i32>} : memref<8x2x32xf32, #tpu.memory_space<vmem>>, vector<1x2x32xf32>,
    %75 = vector.extract_strided_slice %8 {offsets = [2, 0, 0], sizes = [1, 2, 128], strides = [1, 1, 1]} : vector<8x2x128xf32> to vector<1x2x128xf32>
    %76 = vector.shape_cast %75 : vector<1x2x128xf32> to vector<2x128xf32>
    %cst_23 = arith.constant dense<0.000000e+00> : vector<2x128xf32>
    %77 = tpu.matmul %71, %1, %cst_23 {dimension_numbers = #tpu.dot_dimension_numbers<[1], [0], [0], [1], [0, 0, 1, 1], [], []>} : vector<2x32xf32>, vector<32x128xf32>, vector<2x128xf32> -> vector<2x128xf32>
    %78 = arith.addf %76, %77 : vector<2x128xf32>
    %79 = vector.extract_strided_slice %78 {offsets = [0, 0], sizes = [2, 32], strides = [1, 1]} : vector<2x128xf32> to vector<2x32xf32>
    %80 = arith.negf %79 : vector<2x32xf32>
    %81 = math.exp %80 : vector<2x32xf32>
    %cst_24 = arith.constant 1.000000e+00 : f32
    %82 = vector.broadcast %cst_24 : f32 to vector<2x32xf32>
    %83 = arith.addf %82, %81 : vector<2x32xf32>
    %84 = arith.divf %82, %83 : vector<2x32xf32>
    %85 = vector.extract_strided_slice %78 {offsets = [0, 32], sizes = [2, 32], strides = [1, 1]} : vector<2x128xf32> to vector<2x32xf32>
    %86 = arith.negf %85 : vector<2x32xf32>
    %87 = math.exp %86 : vector<2x32xf32>
    %cst_25 = arith.constant 1.000000e+00 : f32
    %88 = vector.broadcast %cst_25 : f32 to vector<2x32xf32>
    %89 = arith.addf %88, %87 : vector<2x32xf32>
    %90 = arith.divf %88, %89 : vector<2x32xf32>
    %91 = vector.extract_strided_slice %78 {offsets = [0, 64], sizes = [2, 32], strides = [1, 1]} : vector<2x128xf32> to vector<2x32xf32>
    %92 = math.tanh %91 : vector<2x32xf32>
    %93 = vector.extract_strided_slice %78 {offsets = [0, 96], sizes = [2, 32], strides = [1, 1]} : vector<2x128xf32> to vector<2x32xf32>
    %94 = arith.negf %93 : vector<2x32xf32>
    %95 = math.exp %94 : vector<2x32xf32>
    %cst_26 = arith.constant 1.000000e+00 : f32
    %96 = vector.broadcast %cst_26 : f32 to vector<2x32xf32>
    %97 = arith.addf %96, %95 : vector<2x32xf32>
    %98 = arith.divf %96, %97 : vector<2x32xf32>
    %99 = arith.mulf %90, %69 : vector<2x32xf32>
    %100 = arith.mulf %84, %92 : vector<2x32xf32>
    %101 = arith.addf %99, %100 : vector<2x32xf32>
    %102 = math.tanh %101 : vector<2x32xf32>
    %103 = arith.mulf %98, %102 : vector<2x32xf32>
    %c2 = arith.constant 2 : index
    %c0_27 = arith.constant 0 : index
    %c0_28 = arith.constant 0 : index
    %104 = vector.load %arg10[%c2, %c0_27, %c0_28] : memref<8x2x32xf32, #tpu.memory_space<vmem>>, vector<1x2x32xf32>
    %105 = vector.shape_cast %104 : vector<1x2x32xf32> to vector<2x32xf32>
    %106 = vector.shape_cast %103 : vector<2x32xf32> to vector<1x2x32xf32>
    tpu.vector_store %arg10[%c2, %c0_27, %c0_28], %106 {strides = array<i32>} : memref<8x2x32xf32, #tpu.memory_space<vmem>>, vector<1x2x32xf32>,
    %107 = vector.extract_strided_slice %8 {offsets = [3, 0, 0], sizes = [1, 2, 128], strides = [1, 1, 1]} : vector<8x2x128xf32> to vector<1x2x128xf32>
    %108 = vector.shape_cast %107 : vector<1x2x128xf32> to vector<2x128xf32>
    %cst_29 = arith.constant dense<0.000000e+00> : vector<2x128xf32>
    %109 = tpu.matmul %103, %1, %cst_29 {dimension_numbers = #tpu.dot_dimension_numbers<[1], [0], [0], [1], [0, 0, 1, 1], [], []>} : vector<2x32xf32>, vector<32x128xf32>, vector<2x128xf32> -> vector<2x128xf32>
    %110 = arith.addf %108, %109 : vector<2x128xf32>
    %111 = vector.extract_strided_slice %110 {offsets = [0, 0], sizes = [2, 32], strides = [1, 1]} : vector<2x128xf32> to vector<2x32xf32>
    %112 = arith.negf %111 : vector<2x32xf32>
    %113 = math.exp %112 : vector<2x32xf32>
    %cst_30 = arith.constant 1.000000e+00 : f32
    %114 = vector.broadcast %cst_30 : f32 to vector<2x32xf32>
    %115 = arith.addf %114, %113 : vector<2x32xf32>
    %116 = arith.divf %114, %115 : vector<2x32xf32>
    %117 = vector.extract_strided_slice %110 {offsets = [0, 32], sizes = [2, 32], strides = [1, 1]} : vector<2x128xf32> to vector<2x32xf32>
    %118 = arith.negf %117 : vector<2x32xf32>
    %119 = math.exp %118 : vector<2x32xf32>
    %cst_31 = arith.constant 1.000000e+00 : f32
    %120 = vector.broadcast %cst_31 : f32 to vector<2x32xf32>
    %121 = arith.addf %120, %119 : vector<2x32xf32>
    %122 = arith.divf %120, %121 : vector<2x32xf32>
    %123 = vector.extract_strided_slice %110 {offsets = [0, 64], sizes = [2, 32], strides = [1, 1]} : vector<2x128xf32> to vector<2x32xf32>
    %124 = math.tanh %123 : vector<2x32xf32>
    %125 = vector.extract_strided_slice %110 {offsets = [0, 96], sizes = [2, 32], strides = [1, 1]} : vector<2x128xf32> to vector<2x32xf32>
    %126 = arith.negf %125 : vector<2x32xf32>
    %127 = math.exp %126 : vector<2x32xf32>
    %cst_32 = arith.constant 1.000000e+00 : f32
    %128 = vector.broadcast %cst_32 : f32 to vector<2x32xf32>
    %129 = arith.addf %128, %127 : vector<2x32xf32>
    %130 = arith.divf %128, %129 : vector<2x32xf32>
    %131 = arith.mulf %122, %101 : vector<2x32xf32>
    %132 = arith.mulf %116, %124 : vector<2x32xf32>
    %133 = arith.addf %131, %132 : vector<2x32xf32>
    %134 = math.tanh %133 : vector<2x32xf32>
    %135 = arith.mulf %130, %134 : vector<2x32xf32>
    %c3 = arith.constant 3 : index
    %c0_33 = arith.constant 0 : index
    %c0_34 = arith.constant 0 : index
    %136 = vector.load %arg10[%c3, %c0_33, %c0_34] : memref<8x2x32xf32, #tpu.memory_space<vmem>>, vector<1x2x32xf32>
    %137 = vector.shape_cast %136 : vector<1x2x32xf32> to vector<2x32xf32>
    %138 = vector.shape_cast %135 : vector<2x32xf32> to vector<1x2x32xf32>
    tpu.vector_store %arg10[%c3, %c0_33, %c0_34], %138 {strides = array<i32>} : memref<8x2x32xf32, #tpu.memory_space<vmem>>, vector<1x2x32xf32>,
    %139 = vector.extract_strided_slice %8 {offsets = [4, 0, 0], sizes = [1, 2, 128], strides = [1, 1, 1]} : vector<8x2x128xf32> to vector<1x2x128xf32>
    %140 = vector.shape_cast %139 : vector<1x2x128xf32> to vector<2x128xf32>
    %cst_35 = arith.constant dense<0.000000e+00> : vector<2x128xf32>
    %141 = tpu.matmul %135, %1, %cst_35 {dimension_numbers = #tpu.dot_dimension_numbers<[1], [0], [0], [1], [0, 0, 1, 1], [], []>} : vector<2x32xf32>, vector<32x128xf32>, vector<2x128xf32> -> vector<2x128xf32>
    %142 = arith.addf %140, %141 : vector<2x128xf32>
    %143 = vector.extract_strided_slice %142 {offsets = [0, 0], sizes = [2, 32], strides = [1, 1]} : vector<2x128xf32> to vector<2x32xf32>
    %144 = arith.negf %143 : vector<2x32xf32>
    %145 = math.exp %144 : vector<2x32xf32>
    %cst_36 = arith.constant 1.000000e+00 : f32
    %146 = vector.broadcast %cst_36 : f32 to vector<2x32xf32>
    %147 = arith.addf %146, %145 : vector<2x32xf32>
    %148 = arith.divf %146, %147 : vector<2x32xf32>
    %149 = vector.extract_strided_slice %142 {offsets = [0, 32], sizes = [2, 32], strides = [1, 1]} : vector<2x128xf32> to vector<2x32xf32>
    %150 = arith.negf %149 : vector<2x32xf32>
    %151 = math.exp %150 : vector<2x32xf32>
    %cst_37 = arith.constant 1.000000e+00 : f32
    %152 = vector.broadcast %cst_37 : f32 to vector<2x32xf32>
    %153 = arith.addf %152, %151 : vector<2x32xf32>
    %154 = arith.divf %152, %153 : vector<2x32xf32>
    %155 = vector.extract_strided_slice %142 {offsets = [0, 64], sizes = [2, 32], strides = [1, 1]} : vector<2x128xf32> to vector<2x32xf32>
    %156 = math.tanh %155 : vector<2x32xf32>
    %157 = vector.extract_strided_slice %142 {offsets = [0, 96], sizes = [2, 32], strides = [1, 1]} : vector<2x128xf32> to vector<2x32xf32>
    %158 = arith.negf %157 : vector<2x32xf32>
    %159 = math.exp %158 : vector<2x32xf32>
    %cst_38 = arith.constant 1.000000e+00 : f32
    %160 = vector.broadcast %cst_38 : f32 to vector<2x32xf32>
    %161 = arith.addf %160, %159 : vector<2x32xf32>
    %162 = arith.divf %160, %161 : vector<2x32xf32>
    %163 = arith.mulf %154, %133 : vector<2x32xf32>
    %164 = arith.mulf %148, %156 : vector<2x32xf32>
    %165 = arith.addf %163, %164 : vector<2x32xf32>
    %166 = math.tanh %165 : vector<2x32xf32>
    %167 = arith.mulf %162, %166 : vector<2x32xf32>
    %c4 = arith.constant 4 : index
    %c0_39 = arith.constant 0 : index
    %c0_40 = arith.constant 0 : index
    %168 = vector.load %arg10[%c4, %c0_39, %c0_40] : memref<8x2x32xf32, #tpu.memory_space<vmem>>, vector<1x2x32xf32>
    %169 = vector.shape_cast %168 : vector<1x2x32xf32> to vector<2x32xf32>
    %170 = vector.shape_cast %167 : vector<2x32xf32> to vector<1x2x32xf32>
    tpu.vector_store %arg10[%c4, %c0_39, %c0_40], %170 {strides = array<i32>} : memref<8x2x32xf32, #tpu.memory_space<vmem>>, vector<1x2x32xf32>,
    %171 = vector.extract_strided_slice %8 {offsets = [5, 0, 0], sizes = [1, 2, 128], strides = [1, 1, 1]} : vector<8x2x128xf32> to vector<1x2x128xf32>
    %172 = vector.shape_cast %171 : vector<1x2x128xf32> to vector<2x128xf32>
    %cst_41 = arith.constant dense<0.000000e+00> : vector<2x128xf32>
    %173 = tpu.matmul %167, %1, %cst_41 {dimension_numbers = #tpu.dot_dimension_numbers<[1], [0], [0], [1], [0, 0, 1, 1], [], []>} : vector<2x32xf32>, vector<32x128xf32>, vector<2x128xf32> -> vector<2x128xf32>
    %174 = arith.addf %172, %173 : vector<2x128xf32>
    %175 = vector.extract_strided_slice %174 {offsets = [0, 0], sizes = [2, 32], strides = [1, 1]} : vector<2x128xf32> to vector<2x32xf32>
    %176 = arith.negf %175 : vector<2x32xf32>
    %177 = math.exp %176 : vector<2x32xf32>
    %cst_42 = arith.constant 1.000000e+00 : f32
    %178 = vector.broadcast %cst_42 : f32 to vector<2x32xf32>
    %179 = arith.addf %178, %177 : vector<2x32xf32>
    %180 = arith.divf %178, %179 : vector<2x32xf32>
    %181 = vector.extract_strided_slice %174 {offsets = [0, 32], sizes = [2, 32], strides = [1, 1]} : vector<2x128xf32> to vector<2x32xf32>
    %182 = arith.negf %181 : vector<2x32xf32>
    %183 = math.exp %182 : vector<2x32xf32>
    %cst_43 = arith.constant 1.000000e+00 : f32
    %184 = vector.broadcast %cst_43 : f32 to vector<2x32xf32>
    %185 = arith.addf %184, %183 : vector<2x32xf32>
    %186 = arith.divf %184, %185 : vector<2x32xf32>
    %187 = vector.extract_strided_slice %174 {offsets = [0, 64], sizes = [2, 32], strides = [1, 1]} : vector<2x128xf32> to vector<2x32xf32>
    %188 = math.tanh %187 : vector<2x32xf32>
    %189 = vector.extract_strided_slice %174 {offsets = [0, 96], sizes = [2, 32], strides = [1, 1]} : vector<2x128xf32> to vector<2x32xf32>
    %190 = arith.negf %189 : vector<2x32xf32>
    %191 = math.exp %190 : vector<2x32xf32>
    %cst_44 = arith.constant 1.000000e+00 : f32
    %192 = vector.broadcast %cst_44 : f32 to vector<2x32xf32>
    %193 = arith.addf %192, %191 : vector<2x32xf32>
    %194 = arith.divf %192, %193 : vector<2x32xf32>
    %195 = arith.mulf %186, %165 : vector<2x32xf32>
    %196 = arith.mulf %180, %188 : vector<2x32xf32>
    %197 = arith.addf %195, %196 : vector<2x32xf32>
    %198 = math.tanh %197 : vector<2x32xf32>
    %199 = arith.mulf %194, %198 : vector<2x32xf32>
    %c5 = arith.constant 5 : index
    %c0_45 = arith.constant 0 : index
    %c0_46 = arith.constant 0 : index
    %200 = vector.load %arg10[%c5, %c0_45, %c0_46] : memref<8x2x32xf32, #tpu.memory_space<vmem>>, vector<1x2x32xf32>
    %201 = vector.shape_cast %200 : vector<1x2x32xf32> to vector<2x32xf32>
    %202 = vector.shape_cast %199 : vector<2x32xf32> to vector<1x2x32xf32>
    tpu.vector_store %arg10[%c5, %c0_45, %c0_46], %202 {strides = array<i32>} : memref<8x2x32xf32, #tpu.memory_space<vmem>>, vector<1x2x32xf32>,
    %203 = vector.extract_strided_slice %8 {offsets = [6, 0, 0], sizes = [1, 2, 128], strides = [1, 1, 1]} : vector<8x2x128xf32> to vector<1x2x128xf32>
    %204 = vector.shape_cast %203 : vector<1x2x128xf32> to vector<2x128xf32>
    %cst_47 = arith.constant dense<0.000000e+00> : vector<2x128xf32>
    %205 = tpu.matmul %199, %1, %cst_47 {dimension_numbers = #tpu.dot_dimension_numbers<[1], [0], [0], [1], [0, 0, 1, 1], [], []>} : vector<2x32xf32>, vector<32x128xf32>, vector<2x128xf32> -> vector<2x128xf32>
    %206 = arith.addf %204, %205 : vector<2x128xf32>
    %207 = vector.extract_strided_slice %206 {offsets = [0, 0], sizes = [2, 32], strides = [1, 1]} : vector<2x128xf32> to vector<2x32xf32>
    %208 = arith.negf %207 : vector<2x32xf32>
    %209 = math.exp %208 : vector<2x32xf32>
    %cst_48 = arith.constant 1.000000e+00 : f32
    %210 = vector.broadcast %cst_48 : f32 to vector<2x32xf32>
    %211 = arith.addf %210, %209 : vector<2x32xf32>
    %212 = arith.divf %210, %211 : vector<2x32xf32>
    %213 = vector.extract_strided_slice %206 {offsets = [0, 32], sizes = [2, 32], strides = [1, 1]} : vector<2x128xf32> to vector<2x32xf32>
    %214 = arith.negf %213 : vector<2x32xf32>
    %215 = math.exp %214 : vector<2x32xf32>
    %cst_49 = arith.constant 1.000000e+00 : f32
    %216 = vector.broadcast %cst_49 : f32 to vector<2x32xf32>
    %217 = arith.addf %216, %215 : vector<2x32xf32>
    %218 = arith.divf %216, %217 : vector<2x32xf32>
    %219 = vector.extract_strided_slice %206 {offsets = [0, 64], sizes = [2, 32], strides = [1, 1]} : vector<2x128xf32> to vector<2x32xf32>
    %220 = math.tanh %219 : vector<2x32xf32>
    %221 = vector.extract_strided_slice %206 {offsets = [0, 96], sizes = [2, 32], strides = [1, 1]} : vector<2x128xf32> to vector<2x32xf32>
    %222 = arith.negf %221 : vector<2x32xf32>
    %223 = math.exp %222 : vector<2x32xf32>
    %cst_50 = arith.constant 1.000000e+00 : f32
    %224 = vector.broadcast %cst_50 : f32 to vector<2x32xf32>
    %225 = arith.addf %224, %223 : vector<2x32xf32>
    %226 = arith.divf %224, %225 : vector<2x32xf32>
    %227 = arith.mulf %218, %197 : vector<2x32xf32>
    %228 = arith.mulf %212, %220 : vector<2x32xf32>
    %229 = arith.addf %227, %228 : vector<2x32xf32>
    %230 = math.tanh %229 : vector<2x32xf32>
    %231 = arith.mulf %226, %230 : vector<2x32xf32>
    %c6 = arith.constant 6 : index
    %c0_51 = arith.constant 0 : index
    %c0_52 = arith.constant 0 : index
    %232 = vector.load %arg10[%c6, %c0_51, %c0_52] : memref<8x2x32xf32, #tpu.memory_space<vmem>>, vector<1x2x32xf32>
    %233 = vector.shape_cast %232 : vector<1x2x32xf32> to vector<2x32xf32>
    %234 = vector.shape_cast %231 : vector<2x32xf32> to vector<1x2x32xf32>
    tpu.vector_store %arg10[%c6, %c0_51, %c0_52], %234 {strides = array<i32>} : memref<8x2x32xf32, #tpu.memory_space<vmem>>, vector<1x2x32xf32>,
    %235 = vector.extract_strided_slice %8 {offsets = [7, 0, 0], sizes = [1, 2, 128], strides = [1, 1, 1]} : vector<8x2x128xf32> to vector<1x2x128xf32>
    %236 = vector.shape_cast %235 : vector<1x2x128xf32> to vector<2x128xf32>
    %cst_53 = arith.constant dense<0.000000e+00> : vector<2x128xf32>
    %237 = tpu.matmul %231, %1, %cst_53 {dimension_numbers = #tpu.dot_dimension_numbers<[1], [0], [0], [1], [0, 0, 1, 1], [], []>} : vector<2x32xf32>, vector<32x128xf32>, vector<2x128xf32> -> vector<2x128xf32>
    %238 = arith.addf %236, %237 : vector<2x128xf32>
    %239 = vector.extract_strided_slice %238 {offsets = [0, 0], sizes = [2, 32], strides = [1, 1]} : vector<2x128xf32> to vector<2x32xf32>
    %240 = arith.negf %239 : vector<2x32xf32>
    %241 = math.exp %240 : vector<2x32xf32>
    %cst_54 = arith.constant 1.000000e+00 : f32
    %242 = vector.broadcast %cst_54 : f32 to vector<2x32xf32>
    %243 = arith.addf %242, %241 : vector<2x32xf32>
    %244 = arith.divf %242, %243 : vector<2x32xf32>
    %245 = vector.extract_strided_slice %238 {offsets = [0, 32], sizes = [2, 32], strides = [1, 1]} : vector<2x128xf32> to vector<2x32xf32>
    %246 = arith.negf %245 : vector<2x32xf32>
    %247 = math.exp %246 : vector<2x32xf32>
    %cst_55 = arith.constant 1.000000e+00 : f32
    %248 = vector.broadcast %cst_55 : f32 to vector<2x32xf32>
    %249 = arith.addf %248, %247 : vector<2x32xf32>
    %250 = arith.divf %248, %249 : vector<2x32xf32>
    %251 = vector.extract_strided_slice %238 {offsets = [0, 64], sizes = [2, 32], strides = [1, 1]} : vector<2x128xf32> to vector<2x32xf32>
    %252 = math.tanh %251 : vector<2x32xf32>
    %253 = vector.extract_strided_slice %238 {offsets = [0, 96], sizes = [2, 32], strides = [1, 1]} : vector<2x128xf32> to vector<2x32xf32>
    %254 = arith.negf %253 : vector<2x32xf32>
    %255 = math.exp %254 : vector<2x32xf32>
    %cst_56 = arith.constant 1.000000e+00 : f32
    %256 = vector.broadcast %cst_56 : f32 to vector<2x32xf32>
    %257 = arith.addf %256, %255 : vector<2x32xf32>
    %258 = arith.divf %256, %257 : vector<2x32xf32>
    %259 = arith.mulf %250, %229 : vector<2x32xf32>
    %260 = arith.mulf %244, %252 : vector<2x32xf32>
    %261 = arith.addf %259, %260 : vector<2x32xf32>
    %262 = math.tanh %261 : vector<2x32xf32>
    %263 = arith.mulf %258, %262 : vector<2x32xf32>
    %c7 = arith.constant 7 : index
    %c0_57 = arith.constant 0 : index
    %c0_58 = arith.constant 0 : index
    %264 = vector.load %arg10[%c7, %c0_57, %c0_58] : memref<8x2x32xf32, #tpu.memory_space<vmem>>, vector<1x2x32xf32>
    %265 = vector.shape_cast %264 : vector<1x2x32xf32> to vector<2x32xf32>
    %266 = vector.shape_cast %263 : vector<2x32xf32> to vector<1x2x32xf32>
    tpu.vector_store %arg10[%c7, %c0_57, %c0_58], %266 {strides = array<i32>} : memref<8x2x32xf32, #tpu.memory_space<vmem>>, vector<1x2x32xf32>,
    %c0_59 = arith.constant 0 : index
    %c0_60 = arith.constant 0 : index
    %c0_61 = arith.constant 0 : index
    %267 = vector.load %arg10[%c0_59, %c0_60, %c0_61] : memref<8x2x32xf32, #tpu.memory_space<vmem>>, vector<8x2x32xf32>
    %c0_62 = arith.constant 0 : index
    %c0_63 = arith.constant 0 : index
    %268 = vector.load %arg5[%c0_62, %c0_63] : memref<32x128xf32, #tpu.memory_space<vmem>>, vector<32x128xf32>
    %269 = vector.shape_cast %267 : vector<8x2x32xf32> to vector<16x32xf32>
    %c0_64 = arith.constant 0 : index
    %c0_65 = arith.constant 0 : index
    %270 = vector.load %arg4[%c0_64, %c0_65] : memref<32x128xf32, #tpu.memory_space<vmem>>, vector<32x128xf32>
    %cst_66 = arith.constant dense<0.000000e+00> : vector<16x128xf32>
    %271 = tpu.matmul %269, %270, %cst_66 {dimension_numbers = #tpu.dot_dimension_numbers<[1], [0], [0], [1], [0, 0, 1, 1], [], []>} : vector<16x32xf32>, vector<32x128xf32>, vector<16x128xf32> -> vector<16x128xf32>
    %c0_67 = arith.constant 0 : index
    %c0_68 = arith.constant 0 : index
    %272 = vector.load %arg6[%c0_67, %c0_68] : memref<1x128xf32, #tpu.memory_space<vmem>>, vector<1x128xf32>
    %273 = vector.broadcast %272 : vector<1x128xf32> to vector<16x128xf32>
    %274 = arith.addf %271, %273 : vector<16x128xf32>
    %275 = vector.shape_cast %274 : vector<16x128xf32> to vector<8x2x128xf32>
    %cst_69 = arith.constant 0.000000e+00 : f32
    %276 = vector.broadcast %cst_69 : f32 to vector<2x32xf32>
    %cst_70 = arith.constant 0.000000e+00 : f32
    %277 = vector.broadcast %cst_70 : f32 to vector<2x32xf32>
    %278 = vector.extract_strided_slice %275 {offsets = [0, 0, 0], sizes = [1, 2, 128], strides = [1, 1, 1]} : vector<8x2x128xf32> to vector<1x2x128xf32>
    %279 = vector.shape_cast %278 : vector<1x2x128xf32> to vector<2x128xf32>
    %cst_71 = arith.constant dense<0.000000e+00> : vector<2x128xf32>
    %280 = tpu.matmul %276, %268, %cst_71 {dimension_numbers = #tpu.dot_dimension_numbers<[1], [0], [0], [1], [0, 0, 1, 1], [], []>} : vector<2x32xf32>, vector<32x128xf32>, vector<2x128xf32> -> vector<2x128xf32>
    %281 = arith.addf %279, %280 : vector<2x128xf32>
    %282 = vector.extract_strided_slice %281 {offsets = [0, 0], sizes = [2, 32], strides = [1, 1]} : vector<2x128xf32> to vector<2x32xf32>
    %283 = arith.negf %282 : vector<2x32xf32>
    %284 = math.exp %283 : vector<2x32xf32>
    %cst_72 = arith.constant 1.000000e+00 : f32
    %285 = vector.broadcast %cst_72 : f32 to vector<2x32xf32>
    %286 = arith.addf %285, %284 : vector<2x32xf32>
    %287 = arith.divf %285, %286 : vector<2x32xf32>
    %288 = vector.extract_strided_slice %281 {offsets = [0, 32], sizes = [2, 32], strides = [1, 1]} : vector<2x128xf32> to vector<2x32xf32>
    %289 = arith.negf %288 : vector<2x32xf32>
    %290 = math.exp %289 : vector<2x32xf32>
    %cst_73 = arith.constant 1.000000e+00 : f32
    %291 = vector.broadcast %cst_73 : f32 to vector<2x32xf32>
    %292 = arith.addf %291, %290 : vector<2x32xf32>
    %293 = arith.divf %291, %292 : vector<2x32xf32>
    %294 = vector.extract_strided_slice %281 {offsets = [0, 64], sizes = [2, 32], strides = [1, 1]} : vector<2x128xf32> to vector<2x32xf32>
    %295 = math.tanh %294 : vector<2x32xf32>
    %296 = vector.extract_strided_slice %281 {offsets = [0, 96], sizes = [2, 32], strides = [1, 1]} : vector<2x128xf32> to vector<2x32xf32>
    %297 = arith.negf %296 : vector<2x32xf32>
    %298 = math.exp %297 : vector<2x32xf32>
    %cst_74 = arith.constant 1.000000e+00 : f32
    %299 = vector.broadcast %cst_74 : f32 to vector<2x32xf32>
    %300 = arith.addf %299, %298 : vector<2x32xf32>
    %301 = arith.divf %299, %300 : vector<2x32xf32>
    %302 = arith.mulf %293, %277 : vector<2x32xf32>
    %303 = arith.mulf %287, %295 : vector<2x32xf32>
    %304 = arith.addf %302, %303 : vector<2x32xf32>
    %305 = math.tanh %304 : vector<2x32xf32>
    %306 = arith.mulf %301, %305 : vector<2x32xf32>
    %c0_75 = arith.constant 0 : index
    %c0_76 = arith.constant 0 : index
    %c0_77 = arith.constant 0 : index
    %307 = vector.load %arg10[%c0_75, %c0_76, %c0_77] : memref<8x2x32xf32, #tpu.memory_space<vmem>>, vector<1x2x32xf32>
    %308 = vector.shape_cast %307 : vector<1x2x32xf32> to vector<2x32xf32>
    %309 = vector.shape_cast %306 : vector<2x32xf32> to vector<1x2x32xf32>
    tpu.vector_store %arg10[%c0_75, %c0_76, %c0_77], %309 {strides = array<i32>} : memref<8x2x32xf32, #tpu.memory_space<vmem>>, vector<1x2x32xf32>,
    %310 = vector.extract_strided_slice %275 {offsets = [1, 0, 0], sizes = [1, 2, 128], strides = [1, 1, 1]} : vector<8x2x128xf32> to vector<1x2x128xf32>
    %311 = vector.shape_cast %310 : vector<1x2x128xf32> to vector<2x128xf32>
    %cst_78 = arith.constant dense<0.000000e+00> : vector<2x128xf32>
    %312 = tpu.matmul %306, %268, %cst_78 {dimension_numbers = #tpu.dot_dimension_numbers<[1], [0], [0], [1], [0, 0, 1, 1], [], []>} : vector<2x32xf32>, vector<32x128xf32>, vector<2x128xf32> -> vector<2x128xf32>
    %313 = arith.addf %311, %312 : vector<2x128xf32>
    %314 = vector.extract_strided_slice %313 {offsets = [0, 0], sizes = [2, 32], strides = [1, 1]} : vector<2x128xf32> to vector<2x32xf32>
    %315 = arith.negf %314 : vector<2x32xf32>
    %316 = math.exp %315 : vector<2x32xf32>
    %cst_79 = arith.constant 1.000000e+00 : f32
    %317 = vector.broadcast %cst_79 : f32 to vector<2x32xf32>
    %318 = arith.addf %317, %316 : vector<2x32xf32>
    %319 = arith.divf %317, %318 : vector<2x32xf32>
    %320 = vector.extract_strided_slice %313 {offsets = [0, 32], sizes = [2, 32], strides = [1, 1]} : vector<2x128xf32> to vector<2x32xf32>
    %321 = arith.negf %320 : vector<2x32xf32>
    %322 = math.exp %321 : vector<2x32xf32>
    %cst_80 = arith.constant 1.000000e+00 : f32
    %323 = vector.broadcast %cst_80 : f32 to vector<2x32xf32>
    %324 = arith.addf %323, %322 : vector<2x32xf32>
    %325 = arith.divf %323, %324 : vector<2x32xf32>
    %326 = vector.extract_strided_slice %313 {offsets = [0, 64], sizes = [2, 32], strides = [1, 1]} : vector<2x128xf32> to vector<2x32xf32>
    %327 = math.tanh %326 : vector<2x32xf32>
    %328 = vector.extract_strided_slice %313 {offsets = [0, 96], sizes = [2, 32], strides = [1, 1]} : vector<2x128xf32> to vector<2x32xf32>
    %329 = arith.negf %328 : vector<2x32xf32>
    %330 = math.exp %329 : vector<2x32xf32>
    %cst_81 = arith.constant 1.000000e+00 : f32
    %331 = vector.broadcast %cst_81 : f32 to vector<2x32xf32>
    %332 = arith.addf %331, %330 : vector<2x32xf32>
    %333 = arith.divf %331, %332 : vector<2x32xf32>
    %334 = arith.mulf %325, %304 : vector<2x32xf32>
    %335 = arith.mulf %319, %327 : vector<2x32xf32>
    %336 = arith.addf %334, %335 : vector<2x32xf32>
    %337 = math.tanh %336 : vector<2x32xf32>
    %338 = arith.mulf %333, %337 : vector<2x32xf32>
    %c1_82 = arith.constant 1 : index
    %c0_83 = arith.constant 0 : index
    %c0_84 = arith.constant 0 : index
    %339 = vector.load %arg10[%c1_82, %c0_83, %c0_84] : memref<8x2x32xf32, #tpu.memory_space<vmem>>, vector<1x2x32xf32>
    %340 = vector.shape_cast %339 : vector<1x2x32xf32> to vector<2x32xf32>
    %341 = vector.shape_cast %338 : vector<2x32xf32> to vector<1x2x32xf32>
    tpu.vector_store %arg10[%c1_82, %c0_83, %c0_84], %341 {strides = array<i32>} : memref<8x2x32xf32, #tpu.memory_space<vmem>>, vector<1x2x32xf32>,
    %342 = vector.extract_strided_slice %275 {offsets = [2, 0, 0], sizes = [1, 2, 128], strides = [1, 1, 1]} : vector<8x2x128xf32> to vector<1x2x128xf32>
    %343 = vector.shape_cast %342 : vector<1x2x128xf32> to vector<2x128xf32>
    %cst_85 = arith.constant dense<0.000000e+00> : vector<2x128xf32>
    %344 = tpu.matmul %338, %268, %cst_85 {dimension_numbers = #tpu.dot_dimension_numbers<[1], [0], [0], [1], [0, 0, 1, 1], [], []>} : vector<2x32xf32>, vector<32x128xf32>, vector<2x128xf32> -> vector<2x128xf32>
    %345 = arith.addf %343, %344 : vector<2x128xf32>
    %346 = vector.extract_strided_slice %345 {offsets = [0, 0], sizes = [2, 32], strides = [1, 1]} : vector<2x128xf32> to vector<2x32xf32>
    %347 = arith.negf %346 : vector<2x32xf32>
    %348 = math.exp %347 : vector<2x32xf32>
    %cst_86 = arith.constant 1.000000e+00 : f32
    %349 = vector.broadcast %cst_86 : f32 to vector<2x32xf32>
    %350 = arith.addf %349, %348 : vector<2x32xf32>
    %351 = arith.divf %349, %350 : vector<2x32xf32>
    %352 = vector.extract_strided_slice %345 {offsets = [0, 32], sizes = [2, 32], strides = [1, 1]} : vector<2x128xf32> to vector<2x32xf32>
    %353 = arith.negf %352 : vector<2x32xf32>
    %354 = math.exp %353 : vector<2x32xf32>
    %cst_87 = arith.constant 1.000000e+00 : f32
    %355 = vector.broadcast %cst_87 : f32 to vector<2x32xf32>
    %356 = arith.addf %355, %354 : vector<2x32xf32>
    %357 = arith.divf %355, %356 : vector<2x32xf32>
    %358 = vector.extract_strided_slice %345 {offsets = [0, 64], sizes = [2, 32], strides = [1, 1]} : vector<2x128xf32> to vector<2x32xf32>
    %359 = math.tanh %358 : vector<2x32xf32>
    %360 = vector.extract_strided_slice %345 {offsets = [0, 96], sizes = [2, 32], strides = [1, 1]} : vector<2x128xf32> to vector<2x32xf32>
    %361 = arith.negf %360 : vector<2x32xf32>
    %362 = math.exp %361 : vector<2x32xf32>
    %cst_88 = arith.constant 1.000000e+00 : f32
    %363 = vector.broadcast %cst_88 : f32 to vector<2x32xf32>
    %364 = arith.addf %363, %362 : vector<2x32xf32>
    %365 = arith.divf %363, %364 : vector<2x32xf32>
    %366 = arith.mulf %357, %336 : vector<2x32xf32>
    %367 = arith.mulf %351, %359 : vector<2x32xf32>
    %368 = arith.addf %366, %367 : vector<2x32xf32>
    %369 = math.tanh %368 : vector<2x32xf32>
    %370 = arith.mulf %365, %369 : vector<2x32xf32>
    %c2_89 = arith.constant 2 : index
    %c0_90 = arith.constant 0 : index
    %c0_91 = arith.constant 0 : index
    %371 = vector.load %arg10[%c2_89, %c0_90, %c0_91] : memref<8x2x32xf32, #tpu.memory_space<vmem>>, vector<1x2x32xf32>
    %372 = vector.shape_cast %371 : vector<1x2x32xf32> to vector<2x32xf32>
    %373 = vector.shape_cast %370 : vector<2x32xf32> to vector<1x2x32xf32>
    tpu.vector_store %arg10[%c2_89, %c0_90, %c0_91], %373 {strides = array<i32>} : memref<8x2x32xf32, #tpu.memory_space<vmem>>, vector<1x2x32xf32>,
    %374 = vector.extract_strided_slice %275 {offsets = [3, 0, 0], sizes = [1, 2, 128], strides = [1, 1, 1]} : vector<8x2x128xf32> to vector<1x2x128xf32>
    %375 = vector.shape_cast %374 : vector<1x2x128xf32> to vector<2x128xf32>
    %cst_92 = arith.constant dense<0.000000e+00> : vector<2x128xf32>
    %376 = tpu.matmul %370, %268, %cst_92 {dimension_numbers = #tpu.dot_dimension_numbers<[1], [0], [0], [1], [0, 0, 1, 1], [], []>} : vector<2x32xf32>, vector<32x128xf32>, vector<2x128xf32> -> vector<2x128xf32>
    %377 = arith.addf %375, %376 : vector<2x128xf32>
    %378 = vector.extract_strided_slice %377 {offsets = [0, 0], sizes = [2, 32], strides = [1, 1]} : vector<2x128xf32> to vector<2x32xf32>
    %379 = arith.negf %378 : vector<2x32xf32>
    %380 = math.exp %379 : vector<2x32xf32>
    %cst_93 = arith.constant 1.000000e+00 : f32
    %381 = vector.broadcast %cst_93 : f32 to vector<2x32xf32>
    %382 = arith.addf %381, %380 : vector<2x32xf32>
    %383 = arith.divf %381, %382 : vector<2x32xf32>
    %384 = vector.extract_strided_slice %377 {offsets = [0, 32], sizes = [2, 32], strides = [1, 1]} : vector<2x128xf32> to vector<2x32xf32>
    %385 = arith.negf %384 : vector<2x32xf32>
    %386 = math.exp %385 : vector<2x32xf32>
    %cst_94 = arith.constant 1.000000e+00 : f32
    %387 = vector.broadcast %cst_94 : f32 to vector<2x32xf32>
    %388 = arith.addf %387, %386 : vector<2x32xf32>
    %389 = arith.divf %387, %388 : vector<2x32xf32>
    %390 = vector.extract_strided_slice %377 {offsets = [0, 64], sizes = [2, 32], strides = [1, 1]} : vector<2x128xf32> to vector<2x32xf32>
    %391 = math.tanh %390 : vector<2x32xf32>
    %392 = vector.extract_strided_slice %377 {offsets = [0, 96], sizes = [2, 32], strides = [1, 1]} : vector<2x128xf32> to vector<2x32xf32>
    %393 = arith.negf %392 : vector<2x32xf32>
    %394 = math.exp %393 : vector<2x32xf32>
    %cst_95 = arith.constant 1.000000e+00 : f32
    %395 = vector.broadcast %cst_95 : f32 to vector<2x32xf32>
    %396 = arith.addf %395, %394 : vector<2x32xf32>
    %397 = arith.divf %395, %396 : vector<2x32xf32>
    %398 = arith.mulf %389, %368 : vector<2x32xf32>
    %399 = arith.mulf %383, %391 : vector<2x32xf32>
    %400 = arith.addf %398, %399 : vector<2x32xf32>
    %401 = math.tanh %400 : vector<2x32xf32>
    %402 = arith.mulf %397, %401 : vector<2x32xf32>
    %c3_96 = arith.constant 3 : index
    %c0_97 = arith.constant 0 : index
    %c0_98 = arith.constant 0 : index
    %403 = vector.load %arg10[%c3_96, %c0_97, %c0_98] : memref<8x2x32xf32, #tpu.memory_space<vmem>>, vector<1x2x32xf32>
    %404 = vector.shape_cast %403 : vector<1x2x32xf32> to vector<2x32xf32>
    %405 = vector.shape_cast %402 : vector<2x32xf32> to vector<1x2x32xf32>
    tpu.vector_store %arg10[%c3_96, %c0_97, %c0_98], %405 {strides = array<i32>} : memref<8x2x32xf32, #tpu.memory_space<vmem>>, vector<1x2x32xf32>,
    %406 = vector.extract_strided_slice %275 {offsets = [4, 0, 0], sizes = [1, 2, 128], strides = [1, 1, 1]} : vector<8x2x128xf32> to vector<1x2x128xf32>
    %407 = vector.shape_cast %406 : vector<1x2x128xf32> to vector<2x128xf32>
    %cst_99 = arith.constant dense<0.000000e+00> : vector<2x128xf32>
    %408 = tpu.matmul %402, %268, %cst_99 {dimension_numbers = #tpu.dot_dimension_numbers<[1], [0], [0], [1], [0, 0, 1, 1], [], []>} : vector<2x32xf32>, vector<32x128xf32>, vector<2x128xf32> -> vector<2x128xf32>
    %409 = arith.addf %407, %408 : vector<2x128xf32>
    %410 = vector.extract_strided_slice %409 {offsets = [0, 0], sizes = [2, 32], strides = [1, 1]} : vector<2x128xf32> to vector<2x32xf32>
    %411 = arith.negf %410 : vector<2x32xf32>
    %412 = math.exp %411 : vector<2x32xf32>
    %cst_100 = arith.constant 1.000000e+00 : f32
    %413 = vector.broadcast %cst_100 : f32 to vector<2x32xf32>
    %414 = arith.addf %413, %412 : vector<2x32xf32>
    %415 = arith.divf %413, %414 : vector<2x32xf32>
    %416 = vector.extract_strided_slice %409 {offsets = [0, 32], sizes = [2, 32], strides = [1, 1]} : vector<2x128xf32> to vector<2x32xf32>
    %417 = arith.negf %416 : vector<2x32xf32>
    %418 = math.exp %417 : vector<2x32xf32>
    %cst_101 = arith.constant 1.000000e+00 : f32
    %419 = vector.broadcast %cst_101 : f32 to vector<2x32xf32>
    %420 = arith.addf %419, %418 : vector<2x32xf32>
    %421 = arith.divf %419, %420 : vector<2x32xf32>
    %422 = vector.extract_strided_slice %409 {offsets = [0, 64], sizes = [2, 32], strides = [1, 1]} : vector<2x128xf32> to vector<2x32xf32>
    %423 = math.tanh %422 : vector<2x32xf32>
    %424 = vector.extract_strided_slice %409 {offsets = [0, 96], sizes = [2, 32], strides = [1, 1]} : vector<2x128xf32> to vector<2x32xf32>
    %425 = arith.negf %424 : vector<2x32xf32>
    %426 = math.exp %425 : vector<2x32xf32>
    %cst_102 = arith.constant 1.000000e+00 : f32
    %427 = vector.broadcast %cst_102 : f32 to vector<2x32xf32>
    %428 = arith.addf %427, %426 : vector<2x32xf32>
    %429 = arith.divf %427, %428 : vector<2x32xf32>
    %430 = arith.mulf %421, %400 : vector<2x32xf32>
    %431 = arith.mulf %415, %423 : vector<2x32xf32>
    %432 = arith.addf %430, %431 : vector<2x32xf32>
    %433 = math.tanh %432 : vector<2x32xf32>
    %434 = arith.mulf %429, %433 : vector<2x32xf32>
    %c4_103 = arith.constant 4 : index
    %c0_104 = arith.constant 0 : index
    %c0_105 = arith.constant 0 : index
    %435 = vector.load %arg10[%c4_103, %c0_104, %c0_105] : memref<8x2x32xf32, #tpu.memory_space<vmem>>, vector<1x2x32xf32>
    %436 = vector.shape_cast %435 : vector<1x2x32xf32> to vector<2x32xf32>
    %437 = vector.shape_cast %434 : vector<2x32xf32> to vector<1x2x32xf32>
    tpu.vector_store %arg10[%c4_103, %c0_104, %c0_105], %437 {strides = array<i32>} : memref<8x2x32xf32, #tpu.memory_space<vmem>>, vector<1x2x32xf32>,
    %438 = vector.extract_strided_slice %275 {offsets = [5, 0, 0], sizes = [1, 2, 128], strides = [1, 1, 1]} : vector<8x2x128xf32> to vector<1x2x128xf32>
    %439 = vector.shape_cast %438 : vector<1x2x128xf32> to vector<2x128xf32>
    %cst_106 = arith.constant dense<0.000000e+00> : vector<2x128xf32>
    %440 = tpu.matmul %434, %268, %cst_106 {dimension_numbers = #tpu.dot_dimension_numbers<[1], [0], [0], [1], [0, 0, 1, 1], [], []>} : vector<2x32xf32>, vector<32x128xf32>, vector<2x128xf32> -> vector<2x128xf32>
    %441 = arith.addf %439, %440 : vector<2x128xf32>
    %442 = vector.extract_strided_slice %441 {offsets = [0, 0], sizes = [2, 32], strides = [1, 1]} : vector<2x128xf32> to vector<2x32xf32>
    %443 = arith.negf %442 : vector<2x32xf32>
    %444 = math.exp %443 : vector<2x32xf32>
    %cst_107 = arith.constant 1.000000e+00 : f32
    %445 = vector.broadcast %cst_107 : f32 to vector<2x32xf32>
    %446 = arith.addf %445, %444 : vector<2x32xf32>
    %447 = arith.divf %445, %446 : vector<2x32xf32>
    %448 = vector.extract_strided_slice %441 {offsets = [0, 32], sizes = [2, 32], strides = [1, 1]} : vector<2x128xf32> to vector<2x32xf32>
    %449 = arith.negf %448 : vector<2x32xf32>
    %450 = math.exp %449 : vector<2x32xf32>
    %cst_108 = arith.constant 1.000000e+00 : f32
    %451 = vector.broadcast %cst_108 : f32 to vector<2x32xf32>
    %452 = arith.addf %451, %450 : vector<2x32xf32>
    %453 = arith.divf %451, %452 : vector<2x32xf32>
    %454 = vector.extract_strided_slice %441 {offsets = [0, 64], sizes = [2, 32], strides = [1, 1]} : vector<2x128xf32> to vector<2x32xf32>
    %455 = math.tanh %454 : vector<2x32xf32>
    %456 = vector.extract_strided_slice %441 {offsets = [0, 96], sizes = [2, 32], strides = [1, 1]} : vector<2x128xf32> to vector<2x32xf32>
    %457 = arith.negf %456 : vector<2x32xf32>
    %458 = math.exp %457 : vector<2x32xf32>
    %cst_109 = arith.constant 1.000000e+00 : f32
    %459 = vector.broadcast %cst_109 : f32 to vector<2x32xf32>
    %460 = arith.addf %459, %458 : vector<2x32xf32>
    %461 = arith.divf %459, %460 : vector<2x32xf32>
    %462 = arith.mulf %453, %432 : vector<2x32xf32>
    %463 = arith.mulf %447, %455 : vector<2x32xf32>
    %464 = arith.addf %462, %463 : vector<2x32xf32>
    %465 = math.tanh %464 : vector<2x32xf32>
    %466 = arith.mulf %461, %465 : vector<2x32xf32>
    %c5_110 = arith.constant 5 : index
    %c0_111 = arith.constant 0 : index
    %c0_112 = arith.constant 0 : index
    %467 = vector.load %arg10[%c5_110, %c0_111, %c0_112] : memref<8x2x32xf32, #tpu.memory_space<vmem>>, vector<1x2x32xf32>
    %468 = vector.shape_cast %467 : vector<1x2x32xf32> to vector<2x32xf32>
    %469 = vector.shape_cast %466 : vector<2x32xf32> to vector<1x2x32xf32>
    tpu.vector_store %arg10[%c5_110, %c0_111, %c0_112], %469 {strides = array<i32>} : memref<8x2x32xf32, #tpu.memory_space<vmem>>, vector<1x2x32xf32>,
    %470 = vector.extract_strided_slice %275 {offsets = [6, 0, 0], sizes = [1, 2, 128], strides = [1, 1, 1]} : vector<8x2x128xf32> to vector<1x2x128xf32>
    %471 = vector.shape_cast %470 : vector<1x2x128xf32> to vector<2x128xf32>
    %cst_113 = arith.constant dense<0.000000e+00> : vector<2x128xf32>
    %472 = tpu.matmul %466, %268, %cst_113 {dimension_numbers = #tpu.dot_dimension_numbers<[1], [0], [0], [1], [0, 0, 1, 1], [], []>} : vector<2x32xf32>, vector<32x128xf32>, vector<2x128xf32> -> vector<2x128xf32>
    %473 = arith.addf %471, %472 : vector<2x128xf32>
    %474 = vector.extract_strided_slice %473 {offsets = [0, 0], sizes = [2, 32], strides = [1, 1]} : vector<2x128xf32> to vector<2x32xf32>
    %475 = arith.negf %474 : vector<2x32xf32>
    %476 = math.exp %475 : vector<2x32xf32>
    %cst_114 = arith.constant 1.000000e+00 : f32
    %477 = vector.broadcast %cst_114 : f32 to vector<2x32xf32>
    %478 = arith.addf %477, %476 : vector<2x32xf32>
    %479 = arith.divf %477, %478 : vector<2x32xf32>
    %480 = vector.extract_strided_slice %473 {offsets = [0, 32], sizes = [2, 32], strides = [1, 1]} : vector<2x128xf32> to vector<2x32xf32>
    %481 = arith.negf %480 : vector<2x32xf32>
    %482 = math.exp %481 : vector<2x32xf32>
    %cst_115 = arith.constant 1.000000e+00 : f32
    %483 = vector.broadcast %cst_115 : f32 to vector<2x32xf32>
    %484 = arith.addf %483, %482 : vector<2x32xf32>
    %485 = arith.divf %483, %484 : vector<2x32xf32>
    %486 = vector.extract_strided_slice %473 {offsets = [0, 64], sizes = [2, 32], strides = [1, 1]} : vector<2x128xf32> to vector<2x32xf32>
    %487 = math.tanh %486 : vector<2x32xf32>
    %488 = vector.extract_strided_slice %473 {offsets = [0, 96], sizes = [2, 32], strides = [1, 1]} : vector<2x128xf32> to vector<2x32xf32>
    %489 = arith.negf %488 : vector<2x32xf32>
    %490 = math.exp %489 : vector<2x32xf32>
    %cst_116 = arith.constant 1.000000e+00 : f32
    %491 = vector.broadcast %cst_116 : f32 to vector<2x32xf32>
    %492 = arith.addf %491, %490 : vector<2x32xf32>
    %493 = arith.divf %491, %492 : vector<2x32xf32>
    %494 = arith.mulf %485, %464 : vector<2x32xf32>
    %495 = arith.mulf %479, %487 : vector<2x32xf32>
    %496 = arith.addf %494, %495 : vector<2x32xf32>
    %497 = math.tanh %496 : vector<2x32xf32>
    %498 = arith.mulf %493, %497 : vector<2x32xf32>
    %c6_117 = arith.constant 6 : index
    %c0_118 = arith.constant 0 : index
    %c0_119 = arith.constant 0 : index
    %499 = vector.load %arg10[%c6_117, %c0_118, %c0_119] : memref<8x2x32xf32, #tpu.memory_space<vmem>>, vector<1x2x32xf32>
    %500 = vector.shape_cast %499 : vector<1x2x32xf32> to vector<2x32xf32>
    %501 = vector.shape_cast %498 : vector<2x32xf32> to vector<1x2x32xf32>
    tpu.vector_store %arg10[%c6_117, %c0_118, %c0_119], %501 {strides = array<i32>} : memref<8x2x32xf32, #tpu.memory_space<vmem>>, vector<1x2x32xf32>,
    %502 = vector.extract_strided_slice %275 {offsets = [7, 0, 0], sizes = [1, 2, 128], strides = [1, 1, 1]} : vector<8x2x128xf32> to vector<1x2x128xf32>
    %503 = vector.shape_cast %502 : vector<1x2x128xf32> to vector<2x128xf32>
    %cst_120 = arith.constant dense<0.000000e+00> : vector<2x128xf32>
    %504 = tpu.matmul %498, %268, %cst_120 {dimension_numbers = #tpu.dot_dimension_numbers<[1], [0], [0], [1], [0, 0, 1, 1], [], []>} : vector<2x32xf32>, vector<32x128xf32>, vector<2x128xf32> -> vector<2x128xf32>
    %505 = arith.addf %503, %504 : vector<2x128xf32>
    %506 = vector.extract_strided_slice %505 {offsets = [0, 0], sizes = [2, 32], strides = [1, 1]} : vector<2x128xf32> to vector<2x32xf32>
    %507 = arith.negf %506 : vector<2x32xf32>
    %508 = math.exp %507 : vector<2x32xf32>
    %cst_121 = arith.constant 1.000000e+00 : f32
    %509 = vector.broadcast %cst_121 : f32 to vector<2x32xf32>
    %510 = arith.addf %509, %508 : vector<2x32xf32>
    %511 = arith.divf %509, %510 : vector<2x32xf32>
    %512 = vector.extract_strided_slice %505 {offsets = [0, 32], sizes = [2, 32], strides = [1, 1]} : vector<2x128xf32> to vector<2x32xf32>
    %513 = arith.negf %512 : vector<2x32xf32>
    %514 = math.exp %513 : vector<2x32xf32>
    %cst_122 = arith.constant 1.000000e+00 : f32
    %515 = vector.broadcast %cst_122 : f32 to vector<2x32xf32>
    %516 = arith.addf %515, %514 : vector<2x32xf32>
    %517 = arith.divf %515, %516 : vector<2x32xf32>
    %518 = vector.extract_strided_slice %505 {offsets = [0, 64], sizes = [2, 32], strides = [1, 1]} : vector<2x128xf32> to vector<2x32xf32>
    %519 = math.tanh %518 : vector<2x32xf32>
    %520 = vector.extract_strided_slice %505 {offsets = [0, 96], sizes = [2, 32], strides = [1, 1]} : vector<2x128xf32> to vector<2x32xf32>
    %521 = arith.negf %520 : vector<2x32xf32>
    %522 = math.exp %521 : vector<2x32xf32>
    %cst_123 = arith.constant 1.000000e+00 : f32
    %523 = vector.broadcast %cst_123 : f32 to vector<2x32xf32>
    %524 = arith.addf %523, %522 : vector<2x32xf32>
    %525 = arith.divf %523, %524 : vector<2x32xf32>
    %526 = arith.mulf %517, %496 : vector<2x32xf32>
    %527 = arith.mulf %511, %519 : vector<2x32xf32>
    %528 = arith.addf %526, %527 : vector<2x32xf32>
    %529 = math.tanh %528 : vector<2x32xf32>
    %530 = arith.mulf %525, %529 : vector<2x32xf32>
    %c7_124 = arith.constant 7 : index
    %c0_125 = arith.constant 0 : index
    %c0_126 = arith.constant 0 : index
    %531 = vector.load %arg10[%c7_124, %c0_125, %c0_126] : memref<8x2x32xf32, #tpu.memory_space<vmem>>, vector<1x2x32xf32>
    %532 = vector.shape_cast %531 : vector<1x2x32xf32> to vector<2x32xf32>
    %533 = vector.shape_cast %530 : vector<2x32xf32> to vector<1x2x32xf32>
    tpu.vector_store %arg10[%c7_124, %c0_125, %c0_126], %533 {strides = array<i32>} : memref<8x2x32xf32, #tpu.memory_space<vmem>>, vector<1x2x32xf32>,
    %c0_127 = arith.constant 0 : index
    %c0_128 = arith.constant 0 : index
    %c0_129 = arith.constant 0 : index
    %534 = vector.load %arg10[%c0_127, %c0_128, %c0_129] : memref<8x2x32xf32, #tpu.memory_space<vmem>>, vector<8x2x32xf32>
    %535 = vector.shape_cast %534 : vector<8x2x32xf32> to vector<16x32xf32>
    %c0_130 = arith.constant 0 : index
    %c0_131 = arith.constant 0 : index
    %536 = vector.load %arg7[%c0_130, %c0_131] : memref<32x8xf32, #tpu.memory_space<vmem>>, vector<32x8xf32>
    %cst_132 = arith.constant dense<0.000000e+00> : vector<16x8xf32>
    %537 = tpu.matmul %535, %536, %cst_132 {dimension_numbers = #tpu.dot_dimension_numbers<[1], [0], [0], [1], [0, 0, 1, 1], [], []>} : vector<16x32xf32>, vector<32x8xf32>, vector<16x8xf32> -> vector<16x8xf32>
    %c0_133 = arith.constant 0 : index
    %c0_134 = arith.constant 0 : index
    %538 = vector.load %arg8[%c0_133, %c0_134] : memref<1x8xf32, #tpu.memory_space<vmem>>, vector<1x8xf32>
    %539 = vector.broadcast %538 : vector<1x8xf32> to vector<16x8xf32>
    %540 = arith.addf %537, %539 : vector<16x8xf32>
    %c0_135 = arith.constant 0 : index
    %c0_136 = arith.constant 0 : index
    %541 = vector.load %arg9[%c0_135, %c0_136] : memref<16x8xf32, #tpu.memory_space<vmem>>, vector<16x8xf32>
    tpu.vector_store %arg9[%c0_135, %c0_136], %540 {strides = array<i32>} : memref<16x8xf32, #tpu.memory_space<vmem>>, vector<16x8xf32>,
    return
  }
}

</mosaic_0001>

<llo_original>
// kernel: tpu_custom_call.1
$region0: #{tpu_custom_call.1}
  #allocation0 [shape = 'u32[]', space=smem, size = 0x4, offset = 0x4, fixed_abs, tag = 'smem constant byte address 0x4 - core index']
  #allocation1 [shape = 'u32[144,128]{1,0:T(1,128)}', space=vmem, size = 0x12000, scoped, tag = 'internal scratch']
  #allocation2 [shape = 'f32[8,2,32]{2,1,0:T(2,128)}', space=vmem, size = 0x2000, scoped, tag = 'scratch operand']
  %s0 = inlined_call_operand.hbm [shape: f32[8,2,16], index: 0, kind: input, shape index: {}]
  %s1 = inlined_call_operand.hbm [shape: f32[16,128], index: 1, kind: input, shape index: {}]
  %s2 = inlined_call_operand.vmem [shape: f32[32,128], index: 2, kind: input, shape index: {}]
  %s3 = inlined_call_operand.vmem [shape: f32[1,128], index: 3, kind: input, shape index: {}]
  %s4 = inlined_call_operand.hbm [shape: f32[32,128], index: 4, kind: input, shape index: {}]
  %s5 = inlined_call_operand.hbm [shape: f32[32,128], index: 5, kind: input, shape index: {}]
  %s6 = inlined_call_operand.vmem [shape: f32[1,128], index: 6, kind: input, shape index: {}]
  %s7 = inlined_call_operand.vmem [shape: f32[32,8], index: 7, kind: input, shape index: {}]
  %s8 = inlined_call_operand.vmem [shape: f32[1,8], index: 8, kind: input, shape index: {}]
  %s9 = inlined_call_operand.vmem [shape: f32[16,8], index: 9, kind: output, shape index: {}]
  %s10 = sld [smem:[#allocation0]]
  $region62: #{tpu_custom_call.1} parent=0
    _
  %s12 = ssub.s32 1, %s10
  %s13 = scalar_select 0, %s12, %s10
  $region1: #{tpu_custom_call.1} parent=0
    #allocation3 [shape = 'u8[8192]{0}', space=vmem, size = 0x2000, scoped, tag = 'input window, operand 0, single buffered']
    #allocation4 [shape = 's32[1]{0}', space=sflag, size = 0x4, scoped, tag = 'scoped memory for tpu_custom_call.1']
    #allocation5 [shape = 'u8[8192]{0}', space=vmem, size = 0x2000, scoped, tag = 'input window, operand 1, single buffered']
    #allocation6 [shape = 's32[1]{0}', space=sflag, size = 0x4, scoped, tag = 'scoped memory for tpu_custom_call.1']
    #allocation7 [shape = 'u8[16384]{0}', space=vmem, size = 0x4000, scoped, tag = 'input window, operand 4, single buffered']
    #allocation8 [shape = 'u8[16384]{0}', space=vmem, size = 0x4000, scoped, tag = 'input window, operand 5, single buffered']
    #allocation9 [shape = 's32[1]{0}', space=sflag, size = 0x4, scoped, tag = 'scoped memory for tpu_custom_call.1']
    %14 = vsyncpa [#allocation4], 0
    %15 = vsyncpa [#allocation6], 0
    %16 = vsyncpa [#allocation9], 0
    // Predicated region
    $region2: #{tpu_custom_call.1} parent=1 // pred_check
      _
    $region3: #{tpu_custom_call.1} parent=1 // pred_check_branch
      %18 = sbr.rel (0) target = $region5
    $region4: #{tpu_custom_call.1} parent=1 // pred_region
      %s20 = ssub.s32 256, 256
      %21 = vsyncadd [#allocation4], %s20
      %s22 = sshll.u32 [#allocation3], 4
      %s23 = int_to_ptr.vmem [resolvable:$true] %s22
      %28 = dma.hbm_to_vmem [thread:$0]  %s0, 256, %s23, [#allocation4], 32, 32, 2
    $region5: #{tpu_custom_call.1} parent=1 // pred_fallthru
      _
    // Predicated region
    $region6: #{tpu_custom_call.1} parent=1 // pred_check
      _
    $region7: #{tpu_custom_call.1} parent=1 // pred_check_branch
      %30 = sbr.rel (0) target = $region9
    $region8: #{tpu_custom_call.1} parent=1 // pred_region
      %s32 = ssub.s32 256, 256
      %33 = vsyncadd [#allocation6], %s32
      %s34 = sshll.u32 [#allocation5], 4
      %s35 = int_to_ptr.vmem [resolvable:$true] %s34
      %40 = dma.hbm_to_vmem [thread:$0]  %s1, 256, %s35, [#allocation6], 128, 128, 8
    $region9: #{tpu_custom_call.1} parent=1 // pred_fallthru
      _
    // Predicated region
    $region10: #{tpu_custom_call.1} parent=1 // pred_check
      _
    $region11: #{tpu_custom_call.1} parent=1 // pred_check_branch
      %42 = sbr.rel (0) target = $region13
    $region12: #{tpu_custom_call.1} parent=1 // pred_region
      _
    $region13: #{tpu_custom_call.1} parent=1 // pred_fallthru
      _
    // Predicated region
    $region14: #{tpu_custom_call.1} parent=1 // pred_check
      _
    $region15: #{tpu_custom_call.1} parent=1 // pred_check_branch
      %44 = sbr.rel (0) target = $region17
    $region16: #{tpu_custom_call.1} parent=1 // pred_region
      _
    $region17: #{tpu_custom_call.1} parent=1 // pred_fallthru
      _
    // Predicated region
    $region18: #{tpu_custom_call.1} parent=1 // pred_check
      _
    $region19: #{tpu_custom_call.1} parent=1 // pred_check_branch
      %46 = sbr.rel (0) target = $region21
    $region20: #{tpu_custom_call.1} parent=1 // pred_region
      %s48 = ssub.s32 512, 512
      %49 = vsyncadd [#allocation6], %s48
      %s50 = sshll.u32 [#allocation7], 4
      %s51 = int_to_ptr.vmem [resolvable:$true] %s50
      %56 = dma.hbm_to_vmem [thread:$0]  %s4, 512, %s51, [#allocation6], 128, 128, 8
    $region21: #{tpu_custom_call.1} parent=1 // pred_fallthru
      _
    // Predicated region
    $region22: #{tpu_custom_call.1} parent=1 // pred_check
      _
    $region23: #{tpu_custom_call.1} parent=1 // pred_check_branch
      %58 = sbr.rel (0) target = $region25
    $region24: #{tpu_custom_call.1} parent=1 // pred_region
      %s60 = ssub.s32 512, 512
      %61 = vsyncadd [#allocation9], %s60
      %s62 = sshll.u32 [#allocation8], 4
      %s63 = int_to_ptr.vmem [resolvable:$true] %s62
      %68 = dma.hbm_to_vmem [thread:$0]  %s5, 512, %s63, [#allocation9], 128, 128, 8
    $region25: #{tpu_custom_call.1} parent=1 // pred_fallthru
      _
    // Predicated region
    $region26: #{tpu_custom_call.1} parent=1 // pred_check
      _
    $region27: #{tpu_custom_call.1} parent=1 // pred_check_branch
      %70 = sbr.rel (0) target = $region29
    $region28: #{tpu_custom_call.1} parent=1 // pred_region
      _
    $region29: #{tpu_custom_call.1} parent=1 // pred_fallthru
      _
    // Predicated region
    $region30: #{tpu_custom_call.1} parent=1 // pred_check
      _
    $region31: #{tpu_custom_call.1} parent=1 // pred_check_branch
      %72 = sbr.rel (0) target = $region33
    $region32: #{tpu_custom_call.1} parent=1 // pred_region
      _
    $region33: #{tpu_custom_call.1} parent=1 // pred_fallthru
      _
    // Predicated region
    $region34: #{tpu_custom_call.1} parent=1 // pred_check
      _
    $region35: #{tpu_custom_call.1} parent=1 // pred_check_branch
      %74 = sbr.rel (0) target = $region37
    $region36: #{tpu_custom_call.1} parent=1 // pred_region
      _
    $region37: #{tpu_custom_call.1} parent=1 // pred_fallthru
      _
    // Predicated region
    $region38: #{tpu_custom_call.1} parent=1 // pred_check
      _
    $region39: #{tpu_custom_call.1} parent=1 // pred_check_branch
      %76 = sbr.rel (0) target = $region41
    $region40: #{tpu_custom_call.1} parent=1 // pred_region
      %77 = dma.done [#allocation4], 256
    $region41: #{tpu_custom_call.1} parent=1 // pred_fallthru
      _
    // Predicated region
    $region42: #{tpu_custom_call.1} parent=1 // pred_check
      _
    $region43: #{tpu_custom_call.1} parent=1 // pred_check_branch
      %79 = sbr.rel (0) target = $region45
    $region44: #{tpu_custom_call.1} parent=1 // pred_region
      %80 = dma.done [#allocation6], 256
    $region45: #{tpu_custom_call.1} parent=1 // pred_fallthru
      _
    // Predicated region
    $region46: #{tpu_custom_call.1} parent=1 // pred_check
      _
    $region47: #{tpu_custom_call.1} parent=1 // pred_check_branch
      %82 = sbr.rel (0) target = $region49
    $region48: #{tpu_custom_call.1} parent=1 // pred_region
      %83 = dma.done [#allocation6], 512
    $region49: #{tpu_custom_call.1} parent=1 // pred_fallthru
      _
    // Predicated region
    $region50: #{tpu_custom_call.1} parent=1 // pred_check
      _
    $region51: #{tpu_custom_call.1} parent=1 // pred_check_branch
      %85 = sbr.rel (0) target = $region53
    $region52: #{tpu_custom_call.1} parent=1 // pred_region
      %86 = dma.done [#allocation9], 512
    $region53: #{tpu_custom_call.1} parent=1 // pred_fallthru
      _
    %v87 = vld [vmem:[#allocation3] sm:$0x3]
    %v88 = vld [vmem:[#allocation3 + $0x2] sm:$0x3]
    %v89 = vld [vmem:[#allocation3 + $0x4] sm:$0x3]
    %v90 = vld [vmem:[#allocation3 + $0x6] sm:$0x3]
    %v91 = vld [vmem:[#allocation3 + $0x8] sm:$0x3]
    %v92 = vld [vmem:[#allocation3 + $0xa] sm:$0x3]
    %v93 = vld [vmem:[#allocation3 + $0xc] sm:$0x3]
    %v94 = vld [vmem:[#allocation3 + $0xe] sm:$0x3]
    %v95 = vld [vmem:[%s2] sm:$0xff]
    %v96 = vld [vmem:[%s2 + $0x8] sm:$0xff]
    %v97 = vld [vmem:[%s2 + $0x10] sm:$0xff]
    %v98 = vld [vmem:[%s2 + $0x18] sm:$0xff]
    %v99 = vld [vmem:[#allocation5] sm:$0xff]
    %v100 = vld [vmem:[#allocation5 + $0x8] sm:$0xff]
    %v101 = vld [vmem:[%s3] sm:$0x1]
    %v103 = vlaneseq
    %v104 = vshrl.u32 %v103, 7
    %v105 = vsub.s32 0, %v104
    %v106 = vrot.slane %v101, %v105
    %v116 = vcombine.low %v87, %v88
    %v117 = vcombine.low %v89, %v90
    %v119 = vunpack.c.l.s4 1983009808
    %v120 = vunpack.c.0.s8 %v119
    %v121 = vlaneseq
    %v122 = vshrl.u32 %v121, 7
    %v123 = vsub.s32 %v120, %v122
    %v124 = vrot.slane %v116, %v123
    %v126 = vunpack.c.l.s4 1983009808
    %v127 = vunpack.c.0.s8 %v126
    %v128 = vlaneseq
    %v129 = vshrl.u32 %v128, 7
    %v130 = vsub.s32 %v127, %v129
    %v131 = vrot.slane %v117, %v130
    %v132 = vcombine.low %v124, %v131
    %v133 = vcombine.low %v91, %v92
    %v134 = vcombine.low %v93, %v94
    %v136 = vunpack.c.l.s4 1983009808
    %v137 = vunpack.c.0.s8 %v136
    %v138 = vlaneseq
    %v139 = vshrl.u32 %v138, 7
    %v140 = vsub.s32 %v137, %v139
    %v141 = vrot.slane %v133, %v140
    %v143 = vunpack.c.l.s4 1983009808
    %v144 = vunpack.c.0.s8 %v143
    %v145 = vlaneseq
    %v146 = vshrl.u32 %v145, 7
    %v147 = vsub.s32 %v144, %v146
    %v148 = vrot.slane %v134, %v147
    %v149 = vcombine.low %v141, %v148
    %vm150 = vcmask 130048
    %v151 = vsel %vm150, %v132, 0
    %v153 = vsel %vm150, %v149, 0
    %155 = vmatprep.subr.mxu0 0.0
    %156 = vmatpush1.msra.mxu0 %v99
    %157 = vmatprep.subr.mxu0 0.0
    %158 = vmatpush1.msra.mxu0 %v100
    %159 = vmatprep.subr.mxu0 0.0
    %160 = vmatpush1.msra.mxu0 0.0
    %161 = vmatprep.subr.mxu0 0.0
    %162 = vmatpush1.msra.mxu0 0.0
    %163 = vmatprep.subr.mxu0 0.0
    %164 = vmatpush1.msra.mxu0 0.0
    %165 = vmatprep.subr.mxu0 0.0
    %166 = vmatpush1.msra.mxu0 0.0
    %167 = vmatprep.subr.mxu0 0.0
    %168 = vmatpush1.msra.mxu0 0.0
    %169 = vmatprep.subr.mxu0 0.0
    %170 = vmatpush1.msra.mxu0 0.0
    %171 = vmatprep.subr.mxu0 0.0
    %172 = vmatpush1.msra.mxu0 0.0
    %173 = vmatprep.subr.mxu0 0.0
    %174 = vmatpush1.msra.mxu0 0.0
    %175 = vmatprep.subr.mxu0 0.0
    %176 = vmatpush1.msra.mxu0 0.0
    %177 = vmatprep.subr.mxu0 0.0
    %178 = vmatpush1.msra.mxu0 0.0
    %179 = vmatprep.subr.mxu0 0.0
    %180 = vmatpush1.msra.mxu0 0.0
    %181 = vmatprep.subr.mxu0 0.0
    %182 = vmatpush1.msra.mxu0 0.0
    %183 = vmatprep.subr.mxu0 0.0
    %184 = vmatpush1.msra.mxu0 0.0
    %185 = vmatprep.subr.mxu0 0.0
    %186 = vmatpush1.msra.mxu0 0.0
    %187 = vmatprep.subr.mxu0 0.0
    %188 = vmatpush1.msra.mxu0 0.0
    %189 = vmatprep.subr.mxu0 0.0
    %190 = vmatpush1.msra.mxu0 0.0
    %191 = vmatprep.subr.mxu0 0.0
    %192 = vmatpush1.msra.mxu0 0.0
    %193 = vmatprep.subr.mxu0 0.0
    %194 = vmatpush1.msra.mxu0 0.0
    %195 = vmatprep.subr.mxu0 0.0
    %196 = vmatpush1.msra.mxu0 0.0
    %197 = vmatprep.subr.mxu0 0.0
    %198 = vmatpush1.msra.mxu0 0.0
    %199 = vmatprep.subr.mxu0 0.0
    %200 = vmatpush1.msra.mxu0 0.0
    %201 = vmatprep.subr.mxu0 0.0
    %202 = vmatpush1.msra.mxu0 0.0
    %203 = vmatprep.subr.mxu0 0.0
    %204 = vmatpush1.msra.mxu0 0.0
    %205 = vmatprep.subr.mxu0 0.0
    %206 = vmatpush1.msra.mxu0 0.0
    %207 = vmatprep.subr.mxu0 0.0
    %208 = vmatpush1.msra.mxu0 0.0
    %209 = vmatprep.subr.mxu0 0.0
    %210 = vmatpush1.msra.mxu0 0.0
    %211 = vmatprep.subr.mxu0 0.0
    %212 = vmatpush1.msra.mxu0 0.0
    %213 = vmatprep.subr.mxu0 0.0
    %214 = vmatpush1.msra.mxu0 0.0
    %215 = vmatprep.subr.mxu0 0.0
    %216 = vmatpush1.msra.mxu0 0.0
    %217 = vmatprep.subr.mxu0 0.0
    %218 = vmatpush1.msra.mxu0 0.0
    %219 = vmatprep.mubr.f32.mxu0 0.0
    %220 = vmatmul.mubr.f32.gmra.mrb[0].mxu0 %v151
    %v221 = vpop.f32.mrb[0].mxu0
    %v222 = vadd.f32 %v106, %v221
    %v223 = vpop.f32.mrb[0].mxu0
    %224 = vmatprep.mubr.f32.mxu0 0.0
    %225 = vmatmul.mubr.f32.gmra.mrb[0].mxu0 %v153
    %v226 = vpop.f32.mrb[0].mxu0
    %v227 = vadd.f32 %v106, %v226
    %v228 = vpop.f32.mrb[0].mxu0
    %229 = vdwg.mxu0
    %v232 = vcombine.high %v222, %v222
    %v234 = vunpack.c.l.s4 1983009808
    %v235 = vunpack.c.0.s8 %v234
    %v236 = vlaneseq
    %v237 = vshrl.u32 %v236, 7
    %v238 = vsub.s32 %v235, %v237
    %v239 = vrot.slane %v222, %v238
    %v241 = vunpack.c.l.s4 1983009808
    %v242 = vunpack.c.0.s8 %v241
    %v243 = vlaneseq
    %v244 = vshrl.u32 %v243, 7
    %v245 = vsub.s32 %v242, %v244
    %v246 = vrot.slane %v232, %v245
    %v247 = vcombine.high %v239, %v239
    %v248 = vcombine.high %v246, %v246
    %v249 = vcombine.high %v227, %v227
    %v251 = vunpack.c.l.s4 1983009808
    %v252 = vunpack.c.0.s8 %v251
    %v253 = vlaneseq
    %v254 = vshrl.u32 %v253, 7
    %v255 = vsub.s32 %v252, %v254
    %v256 = vrot.slane %v227, %v255
    %v258 = vunpack.c.l.s4 1983009808
    %v259 = vunpack.c.0.s8 %v258
    %v260 = vlaneseq
    %v261 = vshrl.u32 %v260, 7
    %v262 = vsub.s32 %v259, %v261
    %v263 = vrot.slane %v249, %v262
    %v264 = vcombine.high %v256, %v256
    %v265 = vcombine.high %v263, %v263
    %vm274 = vcmask 261120
    %v276 = vsel %vm274, 0.0, 0
    %278 = vmatprep.subr.mxu0 0.0
    %279 = vmatpush1.msra.mxu0 %v95
    %280 = vmatprep.subr.mxu0 0.0
    %281 = vmatpush1.msra.mxu0 %v96
    %282 = vmatprep.subr.mxu0 0.0
    %283 = vmatpush1.msra.mxu0 %v97
    %284 = vmatprep.subr.mxu0 0.0
    %285 = vmatpush1.msra.mxu0 %v98
    %286 = vmatprep.subr.mxu0 0.0
    %287 = vmatpush1.msra.mxu0 0.0
    %288 = vmatprep.subr.mxu0 0.0
    %289 = vmatpush1.msra.mxu0 0.0
    %290 = vmatprep.subr.mxu0 0.0
    %291 = vmatpush1.msra.mxu0 0.0
    %292 = vmatprep.subr.mxu0 0.0
    %293 = vmatpush1.msra.mxu0 0.0
    %294 = vmatprep.subr.mxu0 0.0
    %295 = vmatpush1.msra.mxu0 0.0
    %296 = vmatprep.subr.mxu0 0.0
    %297 = vmatpush1.msra.mxu0 0.0
    %298 = vmatprep.subr.mxu0 0.0
    %299 = vmatpush1.msra.mxu0 0.0
    %300 = vmatprep.subr.mxu0 0.0
    %301 = vmatpush1.msra.mxu0 0.0
    %302 = vmatprep.subr.mxu0 0.0
    %303 = vmatpush1.msra.mxu0 0.0
    %304 = vmatprep.subr.mxu0 0.0
    %305 = vmatpush1.msra.mxu0 0.0
    %306 = vmatprep.subr.mxu0 0.0
    %307 = vmatpush1.msra.mxu0 0.0
    %308 = vmatprep.subr.mxu0 0.0
    %309 = vmatpush1.msra.mxu0 0.0
    %310 = vmatprep.subr.mxu0 0.0
    %311 = vmatpush1.msra.mxu0 0.0
    %312 = vmatprep.subr.mxu0 0.0
    %313 = vmatpush1.msra.mxu0 0.0
    %314 = vmatprep.subr.mxu0 0.0
    %315 = vmatpush1.msra.mxu0 0.0
    %316 = vmatprep.subr.mxu0 0.0
    %317 = vmatpush1.msra.mxu0 0.0
    %318 = vmatprep.subr.mxu0 0.0
    %319 = vmatpush1.msra.mxu0 0.0
    %320 = vmatprep.subr.mxu0 0.0
    %321 = vmatpush1.msra.mxu0 0.0
    %322 = vmatprep.subr.mxu0 0.0
    %323 = vmatpush1.msra.mxu0 0.0
    %324 = vmatprep.subr.mxu0 0.0
    %325 = vmatpush1.msra.mxu0 0.0
    %326 = vmatprep.subr.mxu0 0.0
    %327 = vmatpush1.msra.mxu0 0.0
    %328 = vmatprep.subr.mxu0 0.0
    %329 = vmatpush1.msra.mxu0 0.0
    %330 = vmatprep.subr.mxu0 0.0
    %331 = vmatpush1.msra.mxu0 0.0
    %332 = vmatprep.subr.mxu0 0.0
    %333 = vmatpush1.msra.mxu0 0.0
    %334 = vmatprep.subr.mxu0 0.0
    %335 = vmatpush1.msra.mxu0 0.0
    %336 = vmatprep.subr.mxu0 0.0
    %337 = vmatpush1.msra.mxu0 0.0
    %338 = vmatprep.subr.mxu0 0.0
    %339 = vmatpush1.msra.mxu0 0.0
    %340 = vmatprep.subr.mxu0 0.0
    %341 = vmatpush1.msra.mxu0 0.0
    %342 = vmatprep.mubr.f32.mxu0 0.0
    %343 = vmatmul.mubr.f32.gmra.mrb[0].mxu0 %v276
    %v344 = vpop.f32.mrb[0].mxu0
    %v345 = vadd.f32 0.0, %v344
    %v346 = vpop.f32.mrb[0].mxu0
    %347 = vdwg.mxu0
    %v348 = vadd.f32 %v239, %v345
    %v349 = vxor.u32 %v348, 2147483648
    %v350 = vmul.f32 %v349, 1.442695
    %v351 = vpow.pop %v350
    %v352 = vadd.f32 %v351, 1.0
    %v353 = vrcp.pop %v352
    %v354 = vmul.f32 1.0, %v353
    %v355 = vtanh.pop %v348
    %v356 = vmul.f32 %v354, 0.0
    %358 = vrot.lane.b32.xlu0 %v355, 64
    %v359 = vpop.permute.xlu0 %358
    %v361 = vmul.f32 %v354, %v359
    %363 = vrot.lane.b32.xlu0 %v361, 32
    %v364 = vpop.permute.xlu0 %363
    %v366 = vadd.f32 %v356, %v364
    %v367 = vtanh.pop %v366
    %369 = vrot.lane.b32.xlu0 %v367, 64
    %v370 = vpop.permute.xlu0 %369
    %v372 = vmul.f32 %v354, %v370
    %v375 = vunpack.c.l.s4 1983009808
    %v376 = vunpack.c.0.s8 %v375
    %v377 = vlaneseq
    %v378 = vshrl.u32 %v377, 7
    %v379 = vsub.s32 %v376, %v378
    %v380 = vrot.slane %v372, %v379
    %381 = vrot.lane.b32.xlu0 %v380, 32
    %v382 = vpop.permute.xlu0 %381
    %vm384 = vcmask 254976
    %385 = vst.msk [vmem:[#allocation2] sm:$0x3] %vm384, %v382
    %v386 = vsel %vm274, %v382, 0
    %388 = vmatprep.subr.mxu0 0.0
    %389 = vmatpush1.msra.mxu0 %v95
    %390 = vmatprep.subr.mxu0 0.0
    %391 = vmatpush1.msra.mxu0 %v96
    %392 = vmatprep.subr.mxu0 0.0
    %393 = vmatpush1.msra.mxu0 %v97
    %394 = vmatprep.subr.mxu0 0.0
    %395 = vmatpush1.msra.mxu0 %v98
    %396 = vmatprep.subr.mxu0 0.0
    %397 = vmatpush1.msra.mxu0 0.0
    %398 = vmatprep.subr.mxu0 0.0
    %399 = vmatpush1.msra.mxu0 0.0
    %400 = vmatprep.subr.mxu0 0.0
    %401 = vmatpush1.msra.mxu0 0.0
    %402 = vmatprep.subr.mxu0 0.0
    %403 = vmatpush1.msra.mxu0 0.0
    %404 = vmatprep.subr.mxu0 0.0
    %405 = vmatpush1.msra.mxu0 0.0
    %406 = vmatprep.subr.mxu0 0.0
    %407 = vmatpush1.msra.mxu0 0.0
    %408 = vmatprep.subr.mxu0 0.0
    %409 = vmatpush1.msra.mxu0 0.0
    %410 = vmatprep.subr.mxu0 0.0
    %411 = vmatpush1.msra.mxu0 0.0
    %412 = vmatprep.subr.mxu0 0.0
    %413 = vmatpush1.msra.mxu0 0.0
    %414 = vmatprep.subr.mxu0 0.0
    %415 = vmatpush1.msra.mxu0 0.0
    %416 = vmatprep.subr.mxu0 0.0
    %417 = vmatpush1.msra.mxu0 0.0
    %418 = vmatprep.subr.mxu0 0.0
    %419 = vmatpush1.msra.mxu0 0.0
    %420 = vmatprep.subr.mxu0 0.0
    %421 = vmatpush1.msra.mxu0 0.0
    %422 = vmatprep.subr.mxu0 0.0
    %423 = vmatpush1.msra.mxu0 0.0
    %424 = vmatprep.subr.mxu0 0.0
    %425 = vmatpush1.msra.mxu0 0.0
    %426 = vmatprep.subr.mxu0 0.0
    %427 = vmatpush1.msra.mxu0 0.0
    %428 = vmatprep.subr.mxu0 0.0
    %429 = vmatpush1.msra.mxu0 0.0
    %430 = vmatprep.subr.mxu0 0.0
    %431 = vmatpush1.msra.mxu0 0.0
    %432 = vmatprep.subr.mxu0 0.0
    %433 = vmatpush1.msra.mxu0 0.0
    %434 = vmatprep.subr.mxu0 0.0
    %435 = vmatpush1.msra.mxu0 0.0
    %436 = vmatprep.subr.mxu0 0.0
    %437 = vmatpush1.msra.mxu0 0.0
    %438 = vmatprep.subr.mxu0 0.0
    %439 = vmatpush1.msra.mxu0 0.0
    %440 = vmatprep.subr.mxu0 0.0
    %441 = vmatpush1.msra.mxu0 0.0
    %442 = vmatprep.subr.mxu0 0.0
    %443 = vmatpush1.msra.mxu0 0.0
    %444 = vmatprep.subr.mxu0 0.0
    %445 = vmatpush1.msra.mxu0 0.0
    %446 = vmatprep.subr.mxu0 0.0
    %447 = vmatpush1.msra.mxu0 0.0
    %448 = vmatprep.subr.mxu0 0.0
    %449 = vmatpush1.msra.mxu0 0.0
    %450 = vmatprep.subr.mxu0 0.0
    %451 = vmatpush1.msra.mxu0 0.0
    %452 = vmatprep.mubr.f32.mxu0 0.0
    %453 = vmatmul.mubr.f32.gmra.mrb[0].mxu0 %v386
    %v454 = vpop.f32.mrb[0].mxu0
    %v455 = vadd.f32 0.0, %v454
    %v456 = vpop.f32.mrb[0].mxu0
    %457 = vdwg.mxu0
    %v458 = vadd.f32 %v247, %v455
    %v459 = vxor.u32 %v458, 2147483648
    %v460 = vmul.f32 %v459, 1.442695
    %v461 = vpow.pop %v460
    %v462 = vadd.f32 %v461, 1.0
    %v463 = vrcp.pop %v462
    %v464 = vmul.f32 1.0, %v463
    %v465 = vtanh.pop %v458
    %v466 = vmul.f32 %v464, %v366
    %468 = vrot.lane.b32.xlu0 %v465, 64
    %v469 = vpop.permute.xlu0 %468
    %v471 = vmul.f32 %v464, %v469
    %473 = vrot.lane.b32.xlu0 %v471, 32
    %v474 = vpop.permute.xlu0 %473
    %v476 = vadd.f32 %v466, %v474
    %v477 = vtanh.pop %v476
    %479 = vrot.lane.b32.xlu0 %v477, 64
    %v480 = vpop.permute.xlu0 %479
    %v482 = vmul.f32 %v464, %v480
    %v485 = vunpack.c.l.s4 1983009808
    %v486 = vunpack.c.0.s8 %v485
    %v487 = vlaneseq
    %v488 = vshrl.u32 %v487, 7
    %v489 = vsub.s32 %v486, %v488
    %v490 = vrot.slane %v482, %v489
    %491 = vrot.lane.b32.xlu0 %v490, 32
    %v492 = vpop.permute.xlu0 %491
    %s494 = scalar_lea.vmem [#allocation2], 2
    %495 = vst.msk [vmem:[%s494] sm:$0x3] %vm384, %v492
    %v496 = vsel %vm274, %v492, 0
    %498 = vmatprep.subr.mxu0 0.0
    %499 = vmatpush1.msra.mxu0 %v95
    %500 = vmatprep.subr.mxu0 0.0
    %501 = vmatpush1.msra.mxu0 %v96
    %502 = vmatprep.subr.mxu0 0.0
    %503 = vmatpush1.msra.mxu0 %v97
    %504 = vmatprep.subr.mxu0 0.0
    %505 = vmatpush1.msra.mxu0 %v98
    %506 = vmatprep.subr.mxu0 0.0
    %507 = vmatpush1.msra.mxu0 0.0
    %508 = vmatprep.subr.mxu0 0.0
    %509 = vmatpush1.msra.mxu0 0.0
    %510 = vmatprep.subr.mxu0 0.0
    %511 = vmatpush1.msra.mxu0 0.0
    %512 = vmatprep.subr.mxu0 0.0
    %513 = vmatpush1.msra.mxu0 0.0
    %514 = vmatprep.subr.mxu0 0.0
    %515 = vmatpush1.msra.mxu0 0.0
    %516 = vmatprep.subr.mxu0 0.0
    %517 = vmatpush1.msra.mxu0 0.0
    %518 = vmatprep.subr.mxu0 0.0
    %519 = vmatpush1.msra.mxu0 0.0
    %520 = vmatprep.subr.mxu0 0.0
    %521 = vmatpush1.msra.mxu0 0.0
    %522 = vmatprep.subr.mxu0 0.0
    %523 = vmatpush1.msra.mxu0 0.0
    %524 = vmatprep.subr.mxu0 0.0
    %525 = vmatpush1.msra.mxu0 0.0
    %526 = vmatprep.subr.mxu0 0.0
    %527 = vmatpush1.msra.mxu0 0.0
    %528 = vmatprep.subr.mxu0 0.0
    %529 = vmatpush1.msra.mxu0 0.0
    %530 = vmatprep.subr.mxu0 0.0
    %531 = vmatpush1.msra.mxu0 0.0
    %532 = vmatprep.subr.mxu0 0.0
    %533 = vmatpush1.msra.mxu0 0.0
    %534 = vmatprep.subr.mxu0 0.0
    %535 = vmatpush1.msra.mxu0 0.0
    %536 = vmatprep.subr.mxu0 0.0
    %537 = vmatpush1.msra.mxu0 0.0
    %538 = vmatprep.subr.mxu0 0.0
    %539 = vmatpush1.msra.mxu0 0.0
    %540 = vmatprep.subr.mxu0 0.0
    %541 = vmatpush1.msra.mxu0 0.0
    %542 = vmatprep.subr.mxu0 0.0
    %543 = vmatpush1.msra.mxu0 0.0
    %544 = vmatprep.subr.mxu0 0.0
    %545 = vmatpush1.msra.mxu0 0.0
    %546 = vmatprep.subr.mxu0 0.0
    %547 = vmatpush1.msra.mxu0 0.0
    %548 = vmatprep.subr.mxu0 0.0
    %549 = vmatpush1.msra.mxu0 0.0
    %550 = vmatprep.subr.mxu0 0.0
    %551 = vmatpush1.msra.mxu0 0.0
    %552 = vmatprep.subr.mxu0 0.0
    %553 = vmatpush1.msra.mxu0 0.0
    %554 = vmatprep.subr.mxu0 0.0
    %555 = vmatpush1.msra.mxu0 0.0
    %556 = vmatprep.subr.mxu0 0.0
    %557 = vmatpush1.msra.mxu0 0.0
    %558 = vmatprep.subr.mxu0 0.0
    %559 = vmatpush1.msra.mxu0 0.0
    %560 = vmatprep.subr.mxu0 0.0
    %561 = vmatpush1.msra.mxu0 0.0
    %562 = vmatprep.mubr.f32.mxu0 0.0
    %563 = vmatmul.mubr.f32.gmra.mrb[0].mxu0 %v496
    %v564 = vpop.f32.mrb[0].mxu0
    %v565 = vadd.f32 0.0, %v564
    %v566 = vpop.f32.mrb[0].mxu0
    %567 = vdwg.mxu0
    %v568 = vadd.f32 %v246, %v565
    %v569 = vxor.u32 %v568, 2147483648
    %v570 = vmul.f32 %v569, 1.442695
    %v571 = vpow.pop %v570
    %v572 = vadd.f32 %v571, 1.0
    %v573 = vrcp.pop %v572
    %v574 = vmul.f32 1.0, %v573
    %v575 = vtanh.pop %v568
    %v576 = vmul.f32 %v574, %v476
    %578 = vrot.lane.b32.xlu0 %v575, 64
    %v579 = vpop.permute.xlu0 %578
    %v581 = vmul.f32 %v574, %v579
    %583 = vrot.lane.b32.xlu0 %v581, 32
    %v584 = vpop.permute.xlu0 %583
    %v586 = vadd.f32 %v576, %v584
    %v587 = vtanh.pop %v586
    %589 = vrot.lane.b32.xlu0 %v587, 64
    %v590 = vpop.permute.xlu0 %589
    %v592 = vmul.f32 %v574, %v590
    %v595 = vunpack.c.l.s4 1983009808
    %v596 = vunpack.c.0.s8 %v595
    %v597 = vlaneseq
    %v598 = vshrl.u32 %v597, 7
    %v599 = vsub.s32 %v596, %v598
    %v600 = vrot.slane %v592, %v599
    %601 = vrot.lane.b32.xlu0 %v600, 32
    %v602 = vpop.permute.xlu0 %601
    %s604 = scalar_lea.vmem [#allocation2], 4
    %605 = vst.msk [vmem:[%s604] sm:$0x3] %vm384, %v602
    %v606 = vsel %vm274, %v602, 0
    %608 = vmatprep.subr.mxu0 0.0
    %609 = vmatpush1.msra.mxu0 %v95
    %610 = vmatprep.subr.mxu0 0.0
    %611 = vmatpush1.msra.mxu0 %v96
    %612 = vmatprep.subr.mxu0 0.0
    %613 = vmatpush1.msra.mxu0 %v97
    %614 = vmatprep.subr.mxu0 0.0
    %615 = vmatpush1.msra.mxu0 %v98
    %616 = vmatprep.subr.mxu0 0.0
    %617 = vmatpush1.msra.mxu0 0.0
    %618 = vmatprep.subr.mxu0 0.0
    %619 = vmatpush1.msra.mxu0 0.0
    %620 = vmatprep.subr.mxu0 0.0
    %621 = vmatpush1.msra.mxu0 0.0
    %622 = vmatprep.subr.mxu0 0.0
    %623 = vmatpush1.msra.mxu0 0.0
    %624 = vmatprep.subr.mxu0 0.0
    %625 = vmatpush1.msra.mxu0 0.0
    %626 = vmatprep.subr.mxu0 0.0
    %627 = vmatpush1.msra.mxu0 0.0
    %628 = vmatprep.subr.mxu0 0.0
    %629 = vmatpush1.msra.mxu0 0.0
    %630 = vmatprep.subr.mxu0 0.0
    %631 = vmatpush1.msra.mxu0 0.0
    %632 = vmatprep.subr.mxu0 0.0
    %633 = vmatpush1.msra.mxu0 0.0
    %634 = vmatprep.subr.mxu0 0.0
    %635 = vmatpush1.msra.mxu0 0.0
    %636 = vmatprep.subr.mxu0 0.0
    %637 = vmatpush1.msra.mxu0 0.0
    %638 = vmatprep.subr.mxu0 0.0
    %639 = vmatpush1.msra.mxu0 0.0
    %640 = vmatprep.subr.mxu0 0.0
    %641 = vmatpush1.msra.mxu0 0.0
    %642 = vmatprep.subr.mxu0 0.0
    %643 = vmatpush1.msra.mxu0 0.0
    %644 = vmatprep.subr.mxu0 0.0
    %645 = vmatpush1.msra.mxu0 0.0
    %646 = vmatprep.subr.mxu0 0.0
    %647 = vmatpush1.msra.mxu0 0.0
    %648 = vmatprep.subr.mxu0 0.0
    %649 = vmatpush1.msra.mxu0 0.0
    %650 = vmatprep.subr.mxu0 0.0
    %651 = vmatpush1.msra.mxu0 0.0
    %652 = vmatprep.subr.mxu0 0.0
    %653 = vmatpush1.msra.mxu0 0.0
    %654 = vmatprep.subr.mxu0 0.0
    %655 = vmatpush1.msra.mxu0 0.0
    %656 = vmatprep.subr.mxu0 0.0
    %657 = vmatpush1.msra.mxu0 0.0
    %658 = vmatprep.subr.mxu0 0.0
    %659 = vmatpush1.msra.mxu0 0.0
    %660 = vmatprep.subr.mxu0 0.0
    %661 = vmatpush1.msra.mxu0 0.0
    %662 = vmatprep.subr.mxu0 0.0
    %663 = vmatpush1.msra.mxu0 0.0
    %664 = vmatprep.subr.mxu0 0.0
    %665 = vmatpush1.msra.mxu0 0.0
    %666 = vmatprep.subr.mxu0 0.0
    %667 = vmatpush1.msra.mxu0 0.0
    %668 = vmatprep.subr.mxu0 0.0
    %669 = vmatpush1.msra.mxu0 0.0
    %670 = vmatprep.subr.mxu0 0.0
    %671 = vmatpush1.msra.mxu0 0.0
    %672 = vmatprep.mubr.f32.mxu0 0.0
    %673 = vmatmul.mubr.f32.gmra.mrb[0].mxu0 %v606
    %v674 = vpop.f32.mrb[0].mxu0
    %v675 = vadd.f32 0.0, %v674
    %v676 = vpop.f32.mrb[0].mxu0
    %677 = vdwg.mxu0
    %v678 = vadd.f32 %v248, %v675
    %v679 = vxor.u32 %v678, 2147483648
    %v680 = vmul.f32 %v679, 1.442695
    %v681 = vpow.pop %v680
    %v682 = vadd.f32 %v681, 1.0
    %v683 = vrcp.pop %v682
    %v684 = vmul.f32 1.0, %v683
    %v685 = vtanh.pop %v678
    %v686 = vmul.f32 %v684, %v586
    %688 = vrot.lane.b32.xlu0 %v685, 64
    %v689 = vpop.permute.xlu0 %688
    %v691 = vmul.f32 %v684, %v689
    %693 = vrot.lane.b32.xlu0 %v691, 32
    %v694 = vpop.permute.xlu0 %693
    %v696 = vadd.f32 %v686, %v694
    %v697 = vtanh.pop %v696
    %699 = vrot.lane.b32.xlu0 %v697, 64
    %v700 = vpop.permute.xlu0 %699
    %v702 = vmul.f32 %v684, %v700
    %v705 = vunpack.c.l.s4 1983009808
    %v706 = vunpack.c.0.s8 %v705
    %v707 = vlaneseq
    %v708 = vshrl.u32 %v707, 7
    %v709 = vsub.s32 %v706, %v708
    %v710 = vrot.slane %v702, %v709
    %711 = vrot.lane.b32.xlu0 %v710, 32
    %v712 = vpop.permute.xlu0 %711
    %s714 = scalar_lea.vmem [#allocation2], 6
    %715 = vst.msk [vmem:[%s714] sm:$0x3] %vm384, %v712
    %v716 = vsel %vm274, %v712, 0
    %718 = vmatprep.subr.mxu0 0.0
    %719 = vmatpush1.msra.mxu0 %v95
    %720 = vmatprep.subr.mxu0 0.0
    %721 = vmatpush1.msra.mxu0 %v96
    %722 = vmatprep.subr.mxu0 0.0
    %723 = vmatpush1.msra.mxu0 %v97
    %724 = vmatprep.subr.mxu0 0.0
    %725 = vmatpush1.msra.mxu0 %v98
    %726 = vmatprep.subr.mxu0 0.0
    %727 = vmatpush1.msra.mxu0 0.0
    %728 = vmatprep.subr.mxu0 0.0
    %729 = vmatpush1.msra.mxu0 0.0
    %730 = vmatprep.subr.mxu0 0.0
    %731 = vmatpush1.msra.mxu0 0.0
    %732 = vmatprep.subr.mxu0 0.0
    %733 = vmatpush1.msra.mxu0 0.0
    %734 = vmatprep.subr.mxu0 0.0
    %735 = vmatpush1.msra.mxu0 0.0
    %736 = vmatprep.subr.mxu0 0.0
    %737 = vmatpush1.msra.mxu0 0.0
    %738 = vmatprep.subr.mxu0 0.0
    %739 = vmatpush1.msra.mxu0 0.0
    %740 = vmatprep.subr.mxu0 0.0
    %741 = vmatpush1.msra.mxu0 0.0
    %742 = vmatprep.subr.mxu0 0.0
    %743 = vmatpush1.msra.mxu0 0.0
    %744 = vmatprep.subr.mxu0 0.0
    %745 = vmatpush1.msra.mxu0 0.0
    %746 = vmatprep.subr.mxu0 0.0
    %747 = vmatpush1.msra.mxu0 0.0
    %748 = vmatprep.subr.mxu0 0.0
    %749 = vmatpush1.msra.mxu0 0.0
    %750 = vmatprep.subr.mxu0 0.0
    %751 = vmatpush1.msra.mxu0 0.0
    %752 = vmatprep.subr.mxu0 0.0
    %753 = vmatpush1.msra.mxu0 0.0
    %754 = vmatprep.subr.mxu0 0.0
    %755 = vmatpush1.msra.mxu0 0.0
    %756 = vmatprep.subr.mxu0 0.0
    %757 = vmatpush1.msra.mxu0 0.0
    %758 = vmatprep.subr.mxu0 0.0
    %759 = vmatpush1.msra.mxu0 0.0
    %760 = vmatprep.subr.mxu0 0.0
    %761 = vmatpush1.msra.mxu0 0.0
    %762 = vmatprep.subr.mxu0 0.0
    %763 = vmatpush1.msra.mxu0 0.0
    %764 = vmatprep.subr.mxu0 0.0
    %765 = vmatpush1.msra.mxu0 0.0
    %766 = vmatprep.subr.mxu0 0.0
    %767 = vmatpush1.msra.mxu0 0.0
    %768 = vmatprep.subr.mxu0 0.0
    %769 = vmatpush1.msra.mxu0 0.0
    %770 = vmatprep.subr.mxu0 0.0
    %771 = vmatpush1.msra.mxu0 0.0
    %772 = vmatprep.subr.mxu0 0.0
    %773 = vmatpush1.msra.mxu0 0.0
    %774 = vmatprep.subr.mxu0 0.0
    %775 = vmatpush1.msra.mxu0 0.0
    %776 = vmatprep.subr.mxu0 0.0
    %777 = vmatpush1.msra.mxu0 0.0
    %778 = vmatprep.subr.mxu0 0.0
    %779 = vmatpush1.msra.mxu0 0.0
    %780 = vmatprep.subr.mxu0 0.0
    %781 = vmatpush1.msra.mxu0 0.0
    %782 = vmatprep.mubr.f32.mxu0 0.0
    %783 = vmatmul.mubr.f32.gmra.mrb[0].mxu0 %v716
    %v784 = vpop.f32.mrb[0].mxu0
    %v785 = vadd.f32 0.0, %v784
    %v786 = vpop.f32.mrb[0].mxu0
    %787 = vdwg.mxu0
    %v788 = vadd.f32 %v256, %v785
    %v789 = vxor.u32 %v788, 2147483648
    %v790 = vmul.f32 %v789, 1.442695
    %v791 = vpow.pop %v790
    %v792 = vadd.f32 %v791, 1.0
    %v793 = vrcp.pop %v792
    %v794 = vmul.f32 1.0, %v793
    %v795 = vtanh.pop %v788
    %v796 = vmul.f32 %v794, %v696
    %798 = vrot.lane.b32.xlu0 %v795, 64
    %v799 = vpop.permute.xlu0 %798
    %v801 = vmul.f32 %v794, %v799
    %803 = vrot.lane.b32.xlu0 %v801, 32
    %v804 = vpop.permute.xlu0 %803
    %v806 = vadd.f32 %v796, %v804
    %v807 = vtanh.pop %v806
    %809 = vrot.lane.b32.xlu0 %v807, 64
    %v810 = vpop.permute.xlu0 %809
    %v812 = vmul.f32 %v794, %v810
    %v815 = vunpack.c.l.s4 1983009808
    %v816 = vunpack.c.0.s8 %v815
    %v817 = vlaneseq
    %v818 = vshrl.u32 %v817, 7
    %v819 = vsub.s32 %v816, %v818
    %v820 = vrot.slane %v812, %v819
    %821 = vrot.lane.b32.xlu0 %v820, 32
    %v822 = vpop.permute.xlu0 %821
    %s824 = scalar_lea.vmem [#allocation2], 8
    %825 = vst.msk [vmem:[%s824] sm:$0x3] %vm384, %v822
    %v826 = vsel %vm274, %v822, 0
    %828 = vmatprep.subr.mxu0 0.0
    %829 = vmatpush1.msra.mxu0 %v95
    %830 = vmatprep.subr.mxu0 0.0
    %831 = vmatpush1.msra.mxu0 %v96
    %832 = vmatprep.subr.mxu0 0.0
    %833 = vmatpush1.msra.mxu0 %v97
    %834 = vmatprep.subr.mxu0 0.0
    %835 = vmatpush1.msra.mxu0 %v98
    %836 = vmatprep.subr.mxu0 0.0
    %837 = vmatpush1.msra.mxu0 0.0
    %838 = vmatprep.subr.mxu0 0.0
    %839 = vmatpush1.msra.mxu0 0.0
    %840 = vmatprep.subr.mxu0 0.0
    %841 = vmatpush1.msra.mxu0 0.0
    %842 = vmatprep.subr.mxu0 0.0
    %843 = vmatpush1.msra.mxu0 0.0
    %844 = vmatprep.subr.mxu0 0.0
    %845 = vmatpush1.msra.mxu0 0.0
    %846 = vmatprep.subr.mxu0 0.0
    %847 = vmatpush1.msra.mxu0 0.0
    %848 = vmatprep.subr.mxu0 0.0
    %849 = vmatpush1.msra.mxu0 0.0
    %850 = vmatprep.subr.mxu0 0.0
    %851 = vmatpush1.msra.mxu0 0.0
    %852 = vmatprep.subr.mxu0 0.0
    %853 = vmatpush1.msra.mxu0 0.0
    %854 = vmatprep.subr.mxu0 0.0
    %855 = vmatpush1.msra.mxu0 0.0
    %856 = vmatprep.subr.mxu0 0.0
    %857 = vmatpush1.msra.mxu0 0.0
    %858 = vmatprep.subr.mxu0 0.0
    %859 = vmatpush1.msra.mxu0 0.0
    %860 = vmatprep.subr.mxu0 0.0
    %861 = vmatpush1.msra.mxu0 0.0
    %862 = vmatprep.subr.mxu0 0.0
    %863 = vmatpush1.msra.mxu0 0.0
    %864 = vmatprep.subr.mxu0 0.0
    %865 = vmatpush1.msra.mxu0 0.0
    %866 = vmatprep.subr.mxu0 0.0
    %867 = vmatpush1.msra.mxu0 0.0
    %868 = vmatprep.subr.mxu0 0.0
    %869 = vmatpush1.msra.mxu0 0.0
    %870 = vmatprep.subr.mxu0 0.0
    %871 = vmatpush1.msra.mxu0 0.0
    %872 = vmatprep.subr.mxu0 0.0
    %873 = vmatpush1.msra.mxu0 0.0
    %874 = vmatprep.subr.mxu0 0.0
    %875 = vmatpush1.msra.mxu0 0.0
    %876 = vmatprep.subr.mxu0 0.0
    %877 = vmatpush1.msra.mxu0 0.0
    %878 = vmatprep.subr.mxu0 0.0
    %879 = vmatpush1.msra.mxu0 0.0
    %880 = vmatprep.subr.mxu0 0.0
    %881 = vmatpush1.msra.mxu0 0.0
    %882 = vmatprep.subr.mxu0 0.0
    %883 = vmatpush1.msra.mxu0 0.0
    %884 = vmatprep.subr.mxu0 0.0
    %885 = vmatpush1.msra.mxu0 0.0
    %886 = vmatprep.subr.mxu0 0.0
    %887 = vmatpush1.msra.mxu0 0.0
    %888 = vmatprep.subr.mxu0 0.0
    %889 = vmatpush1.msra.mxu0 0.0
    %890 = vmatprep.subr.mxu0 0.0
    %891 = vmatpush1.msra.mxu0 0.0
    %892 = vmatprep.mubr.f32.mxu0 0.0
    %893 = vmatmul.mubr.f32.gmra.mrb[0].mxu0 %v826
    %v894 = vpop.f32.mrb[0].mxu0
    %v895 = vadd.f32 0.0, %v894
    %v896 = vpop.f32.mrb[0].mxu0
    %897 = vdwg.mxu0
    %v898 = vadd.f32 %v264, %v895
    %v899 = vxor.u32 %v898, 2147483648
    %v900 = vmul.f32 %v899, 1.442695
    %v901 = vpow.pop %v900
    %v902 = vadd.f32 %v901, 1.0
    %v903 = vrcp.pop %v902
    %v904 = vmul.f32 1.0, %v903
    %v905 = vtanh.pop %v898
    %v906 = vmul.f32 %v904, %v806
    %908 = vrot.lane.b32.xlu0 %v905, 64
    %v909 = vpop.permute.xlu0 %908
    %v911 = vmul.f32 %v904, %v909
    %913 = vrot.lane.b32.xlu0 %v911, 32
    %v914 = vpop.permute.xlu0 %913
    %v916 = vadd.f32 %v906, %v914
    %v917 = vtanh.pop %v916
    %919 = vrot.lane.b32.xlu0 %v917, 64
    %v920 = vpop.permute.xlu0 %919
    %v922 = vmul.f32 %v904, %v920
    %v925 = vunpack.c.l.s4 1983009808
    %v926 = vunpack.c.0.s8 %v925
    %v927 = vlaneseq
    %v928 = vshrl.u32 %v927, 7
    %v929 = vsub.s32 %v926, %v928
    %v930 = vrot.slane %v922, %v929
    %931 = vrot.lane.b32.xlu0 %v930, 32
    %v932 = vpop.permute.xlu0 %931
    %s934 = scalar_lea.vmem [#allocation2], 10
    %935 = vst.msk [vmem:[%s934] sm:$0x3] %vm384, %v932
    %v936 = vsel %vm274, %v932, 0
    %938 = vmatprep.subr.mxu0 0.0
    %939 = vmatpush1.msra.mxu0 %v95
    %940 = vmatprep.subr.mxu0 0.0
    %941 = vmatpush1.msra.mxu0 %v96
    %942 = vmatprep.subr.mxu0 0.0
    %943 = vmatpush1.msra.mxu0 %v97
    %944 = vmatprep.subr.mxu0 0.0
    %945 = vmatpush1.msra.mxu0 %v98
    %946 = vmatprep.subr.mxu0 0.0
    %947 = vmatpush1.msra.mxu0 0.0
    %948 = vmatprep.subr.mxu0 0.0
    %949 = vmatpush1.msra.mxu0 0.0
    %950 = vmatprep.subr.mxu0 0.0
    %951 = vmatpush1.msra.mxu0 0.0
    %952 = vmatprep.subr.mxu0 0.0
    %953 = vmatpush1.msra.mxu0 0.0
    %954 = vmatprep.subr.mxu0 0.0
    %955 = vmatpush1.msra.mxu0 0.0
    %956 = vmatprep.subr.mxu0 0.0
    %957 = vmatpush1.msra.mxu0 0.0
    %958 = vmatprep.subr.mxu0 0.0
    %959 = vmatpush1.msra.mxu0 0.0
    %960 = vmatprep.subr.mxu0 0.0
    %961 = vmatpush1.msra.mxu0 0.0
    %962 = vmatprep.subr.mxu0 0.0
    %963 = vmatpush1.msra.mxu0 0.0
    %964 = vmatprep.subr.mxu0 0.0
    %965 = vmatpush1.msra.mxu0 0.0
    %966 = vmatprep.subr.mxu0 0.0
    %967 = vmatpush1.msra.mxu0 0.0
    %968 = vmatprep.subr.mxu0 0.0
    %969 = vmatpush1.msra.mxu0 0.0
    %970 = vmatprep.subr.mxu0 0.0
    %971 = vmatpush1.msra.mxu0 0.0
    %972 = vmatprep.subr.mxu0 0.0
    %973 = vmatpush1.msra.mxu0 0.0
    %974 = vmatprep.subr.mxu0 0.0
    %975 = vmatpush1.msra.mxu0 0.0
    %976 = vmatprep.subr.mxu0 0.0
    %977 = vmatpush1.msra.mxu0 0.0
    %978 = vmatprep.subr.mxu0 0.0
    %979 = vmatpush1.msra.mxu0 0.0
    %980 = vmatprep.subr.mxu0 0.0
    %981 = vmatpush1.msra.mxu0 0.0
    %982 = vmatprep.subr.mxu0 0.0
    %983 = vmatpush1.msra.mxu0 0.0
    %984 = vmatprep.subr.mxu0 0.0
    %985 = vmatpush1.msra.mxu0 0.0
    %986 = vmatprep.subr.mxu0 0.0
    %987 = vmatpush1.msra.mxu0 0.0
    %988 = vmatprep.subr.mxu0 0.0
    %989 = vmatpush1.msra.mxu0 0.0
    %990 = vmatprep.subr.mxu0 0.0
    %991 = vmatpush1.msra.mxu0 0.0
    %992 = vmatprep.subr.mxu0 0.0
    %993 = vmatpush1.msra.mxu0 0.0
    %994 = vmatprep.subr.mxu0 0.0
    %995 = vmatpush1.msra.mxu0 0.0
    %996 = vmatprep.subr.mxu0 0.0
    %997 = vmatpush1.msra.mxu0 0.0
    %998 = vmatprep.subr.mxu0 0.0
    %999 = vmatpush1.msra.mxu0 0.0
    %1000 = vmatprep.subr.mxu0 0.0
    %1001 = vmatpush1.msra.mxu0 0.0
    %1002 = vmatprep.mubr.f32.mxu0 0.0
    %1003 = vmatmul.mubr.f32.gmra.mrb[0].mxu0 %v936
    %v1004 = vpop.f32.mrb[0].mxu0
    %v1005 = vadd.f32 0.0, %v1004
    %v1006 = vpop.f32.mrb[0].mxu0
    %1007 = vdwg.mxu0
    %v1008 = vadd.f32 %v263, %v1005
    %v1009 = vxor.u32 %v1008, 2147483648
    %v1010 = vmul.f32 %v1009, 1.442695
    %v1011 = vpow.pop %v1010
    %v1012 = vadd.f32 %v1011, 1.0
    %v1013 = vrcp.pop %v1012
    %v1014 = vmul.f32 1.0, %v1013
    %v1015 = vtanh.pop %v1008
    %v1016 = vmul.f32 %v1014, %v916
    %1018 = vrot.lane.b32.xlu0 %v1015, 64
    %v1019 = vpop.permute.xlu0 %1018
    %v1021 = vmul.f32 %v1014, %v1019
    %1023 = vrot.lane.b32.xlu0 %v1021, 32
    %v1024 = vpop.permute.xlu0 %1023
    %v1026 = vadd.f32 %v1016, %v1024
    %v1027 = vtanh.pop %v1026
    %1029 = vrot.lane.b32.xlu0 %v1027, 64
    %v1030 = vpop.permute.xlu0 %1029
    %v1032 = vmul.f32 %v1014, %v1030
    %v1035 = vunpack.c.l.s4 1983009808
    %v1036 = vunpack.c.0.s8 %v1035
    %v1037 = vlaneseq
    %v1038 = vshrl.u32 %v1037, 7
    %v1039 = vsub.s32 %v1036, %v1038
    %v1040 = vrot.slane %v1032, %v1039
    %1041 = vrot.lane.b32.xlu0 %v1040, 32
    %v1042 = vpop.permute.xlu0 %1041
    %s1044 = scalar_lea.vmem [#allocation2], 12
    %1045 = vst.msk [vmem:[%s1044] sm:$0x3] %vm384, %v1042
    %v1046 = vsel %vm274, %v1042, 0
    %1048 = vmatprep.subr.mxu0 0.0
    %1049 = vmatpush1.msra.mxu0 %v95
    %1050 = vmatprep.subr.mxu0 0.0
    %1051 = vmatpush1.msra.mxu0 %v96
    %1052 = vmatprep.subr.mxu0 0.0
    %1053 = vmatpush1.msra.mxu0 %v97
    %1054 = vmatprep.subr.mxu0 0.0
    %1055 = vmatpush1.msra.mxu0 %v98
    %1056 = vmatprep.subr.mxu0 0.0
    %1057 = vmatpush1.msra.mxu0 0.0
    %1058 = vmatprep.subr.mxu0 0.0
    %1059 = vmatpush1.msra.mxu0 0.0
    %1060 = vmatprep.subr.mxu0 0.0
    %1061 = vmatpush1.msra.mxu0 0.0
    %1062 = vmatprep.subr.mxu0 0.0
    %1063 = vmatpush1.msra.mxu0 0.0
    %1064 = vmatprep.subr.mxu0 0.0
    %1065 = vmatpush1.msra.mxu0 0.0
    %1066 = vmatprep.subr.mxu0 0.0
    %1067 = vmatpush1.msra.mxu0 0.0
    %1068 = vmatprep.subr.mxu0 0.0
    %1069 = vmatpush1.msra.mxu0 0.0
    %1070 = vmatprep.subr.mxu0 0.0
    %1071 = vmatpush1.msra.mxu0 0.0
    %1072 = vmatprep.subr.mxu0 0.0
    %1073 = vmatpush1.msra.mxu0 0.0
    %1074 = vmatprep.subr.mxu0 0.0
    %1075 = vmatpush1.msra.mxu0 0.0
    %1076 = vmatprep.subr.mxu0 0.0
    %1077 = vmatpush1.msra.mxu0 0.0
    %1078 = vmatprep.subr.mxu0 0.0
    %1079 = vmatpush1.msra.mxu0 0.0
    %1080 = vmatprep.subr.mxu0 0.0
    %1081 = vmatpush1.msra.mxu0 0.0
    %1082 = vmatprep.subr.mxu0 0.0
    %1083 = vmatpush1.msra.mxu0 0.0
    %1084 = vmatprep.subr.mxu0 0.0
    %1085 = vmatpush1.msra.mxu0 0.0
    %1086 = vmatprep.subr.mxu0 0.0
    %1087 = vmatpush1.msra.mxu0 0.0
    %1088 = vmatprep.subr.mxu0 0.0
    %1089 = vmatpush1.msra.mxu0 0.0
    %1090 = vmatprep.subr.mxu0 0.0
    %1091 = vmatpush1.msra.mxu0 0.0
    %1092 = vmatprep.subr.mxu0 0.0
    %1093 = vmatpush1.msra.mxu0 0.0
    %1094 = vmatprep.subr.mxu0 0.0
    %1095 = vmatpush1.msra.mxu0 0.0
    %1096 = vmatprep.subr.mxu0 0.0
    %1097 = vmatpush1.msra.mxu0 0.0
    %1098 = vmatprep.subr.mxu0 0.0
    %1099 = vmatpush1.msra.mxu0 0.0
    %1100 = vmatprep.subr.mxu0 0.0
    %1101 = vmatpush1.msra.mxu0 0.0
    %1102 = vmatprep.subr.mxu0 0.0
    %1103 = vmatpush1.msra.mxu0 0.0
    %1104 = vmatprep.subr.mxu0 0.0
    %1105 = vmatpush1.msra.mxu0 0.0
    %1106 = vmatprep.subr.mxu0 0.0
    %1107 = vmatpush1.msra.mxu0 0.0
    %1108 = vmatprep.subr.mxu0 0.0
    %1109 = vmatpush1.msra.mxu0 0.0
    %1110 = vmatprep.subr.mxu0 0.0
    %1111 = vmatpush1.msra.mxu0 0.0
    %1112 = vmatprep.mubr.f32.mxu0 0.0
    %1113 = vmatmul.mubr.f32.gmra.mrb[0].mxu0 %v1046
    %v1114 = vpop.f32.mrb[0].mxu0
    %v1115 = vadd.f32 0.0, %v1114
    %v1116 = vpop.f32.mrb[0].mxu0
    %1117 = vdwg.mxu0
    %v1118 = vadd.f32 %v265, %v1115
    %v1119 = vxor.u32 %v1118, 2147483648
    %v1120 = vmul.f32 %v1119, 1.442695
    %v1121 = vpow.pop %v1120
    %v1122 = vadd.f32 %v1121, 1.0
    %v1123 = vrcp.pop %v1122
    %v1124 = vmul.f32 1.0, %v1123
    %v1125 = vtanh.pop %v1118
    %v1126 = vmul.f32 %v1124, %v1026
    %1128 = vrot.lane.b32.xlu0 %v1125, 64
    %v1129 = vpop.permute.xlu0 %1128
    %v1131 = vmul.f32 %v1124, %v1129
    %1133 = vrot.lane.b32.xlu0 %v1131, 32
    %v1134 = vpop.permute.xlu0 %1133
    %v1136 = vadd.f32 %v1126, %v1134
    %v1137 = vtanh.pop %v1136
    %1139 = vrot.lane.b32.xlu0 %v1137, 64
    %v1140 = vpop.permute.xlu0 %1139
    %v1142 = vmul.f32 %v1124, %v1140
    %v1145 = vunpack.c.l.s4 1983009808
    %v1146 = vunpack.c.0.s8 %v1145
    %v1147 = vlaneseq
    %v1148 = vshrl.u32 %v1147, 7
    %v1149 = vsub.s32 %v1146, %v1148
    %v1150 = vrot.slane %v1142, %v1149
    %1151 = vrot.lane.b32.xlu0 %v1150, 32
    %v1152 = vpop.permute.xlu0 %1151
    %s1154 = scalar_lea.vmem [#allocation2], 14
    %1155 = vst.msk [vmem:[%s1154] sm:$0x3] %vm384, %v1152
    %v1156 = vld [vmem:[#allocation2] sm:$0x3]
    %v1157 = vld [vmem:[#allocation2 + $0x2] sm:$0x3]
    %v1158 = vld [vmem:[#allocation2 + $0x4] sm:$0x3]
    %v1159 = vld [vmem:[#allocation2 + $0x6] sm:$0x3]
    %v1160 = vld [vmem:[#allocation2 + $0x8] sm:$0x3]
    %v1161 = vld [vmem:[#allocation2 + $0xa] sm:$0x3]
    %v1162 = vld [vmem:[#allocation2 + $0xc] sm:$0x3]
    %v1163 = vld [vmem:[#allocation2 + $0xe] sm:$0x3]
    %v1164 = vld [vmem:[#allocation8] sm:$0xff]
    %v1165 = vld [vmem:[#allocation8 + $0x8] sm:$0xff]
    %v1166 = vld [vmem:[#allocation8 + $0x10] sm:$0xff]
    %v1167 = vld [vmem:[#allocation8 + $0x18] sm:$0xff]
    %v1168 = vld [vmem:[#allocation7] sm:$0xff]
    %v1169 = vld [vmem:[#allocation7 + $0x8] sm:$0xff]
    %v1170 = vld [vmem:[#allocation7 + $0x10] sm:$0xff]
    %v1171 = vld [vmem:[#allocation7 + $0x18] sm:$0xff]
    %v1172 = vld [vmem:[%s6] sm:$0x1]
    %v1174 = vlaneseq
    %v1175 = vshrl.u32 %v1174, 7
    %v1176 = vsub.s32 0, %v1175
    %v1177 = vrot.slane %v1172, %v1176
    %v1187 = vcombine.low %v1156, %v1157
    %v1188 = vcombine.low %v1158, %v1159
    %v1190 = vunpack.c.l.s4 1983009808
    %v1191 = vunpack.c.0.s8 %v1190
    %v1192 = vlaneseq
    %v1193 = vshrl.u32 %v1192, 7
    %v1194 = vsub.s32 %v1191, %v1193
    %v1195 = vrot.slane %v1187, %v1194
    %v1197 = vunpack.c.l.s4 1983009808
    %v1198 = vunpack.c.0.s8 %v1197
    %v1199 = vlaneseq
    %v1200 = vshrl.u32 %v1199, 7
    %v1201 = vsub.s32 %v1198, %v1200
    %v1202 = vrot.slane %v1188, %v1201
    %v1203 = vcombine.low %v1195, %v1202
    %v1204 = vcombine.low %v1160, %v1161
    %v1205 = vcombine.low %v1162, %v1163
    %v1207 = vunpack.c.l.s4 1983009808
    %v1208 = vunpack.c.0.s8 %v1207
    %v1209 = vlaneseq
    %v1210 = vshrl.u32 %v1209, 7
    %v1211 = vsub.s32 %v1208, %v1210
    %v1212 = vrot.slane %v1204, %v1211
    %v1214 = vunpack.c.l.s4 1983009808
    %v1215 = vunpack.c.0.s8 %v1214
    %v1216 = vlaneseq
    %v1217 = vshrl.u32 %v1216, 7
    %v1218 = vsub.s32 %v1215, %v1217
    %v1219 = vrot.slane %v1205, %v1218
    %v1220 = vcombine.low %v1212, %v1219
    %v1221 = vsel %vm274, %v1203, 0
    %v1223 = vsel %vm274, %v1220, 0
    %1225 = vmatprep.subr.mxu0 0.0
    %1226 = vmatpush1.msra.mxu0 %v1168
    %1227 = vmatprep.subr.mxu0 0.0
    %1228 = vmatpush1.msra.mxu0 %v1169
    %1229 = vmatprep.subr.mxu0 0.0
    %1230 = vmatpush1.msra.mxu0 %v1170
    %1231 = vmatprep.subr.mxu0 0.0
    %1232 = vmatpush1.msra.mxu0 %v1171
    %1233 = vmatprep.subr.mxu0 0.0
    %1234 = vmatpush1.msra.mxu0 0.0
    %1235 = vmatprep.subr.mxu0 0.0
    %1236 = vmatpush1.msra.mxu0 0.0
    %1237 = vmatprep.subr.mxu0 0.0
    %1238 = vmatpush1.msra.mxu0 0.0
    %1239 = vmatprep.subr.mxu0 0.0
    %1240 = vmatpush1.msra.mxu0 0.0
    %1241 = vmatprep.subr.mxu0 0.0
    %1242 = vmatpush1.msra.mxu0 0.0
    %1243 = vmatprep.subr.mxu0 0.0
    %1244 = vmatpush1.msra.mxu0 0.0
    %1245 = vmatprep.subr.mxu0 0.0
    %1246 = vmatpush1.msra.mxu0 0.0
    %1247 = vmatprep.subr.mxu0 0.0
    %1248 = vmatpush1.msra.mxu0 0.0
    %1249 = vmatprep.subr.mxu0 0.0
    %1250 = vmatpush1.msra.mxu0 0.0
    %1251 = vmatprep.subr.mxu0 0.0
    %1252 = vmatpush1.msra.mxu0 0.0
    %1253 = vmatprep.subr.mxu0 0.0
    %1254 = vmatpush1.msra.mxu0 0.0
    %1255 = vmatprep.subr.mxu0 0.0
    %1256 = vmatpush1.msra.mxu0 0.0
    %1257 = vmatprep.subr.mxu0 0.0
    %1258 = vmatpush1.msra.mxu0 0.0
    %1259 = vmatprep.subr.mxu0 0.0
    %1260 = vmatpush1.msra.mxu0 0.0
    %1261 = vmatprep.subr.mxu0 0.0
    %1262 = vmatpush1.msra.mxu0 0.0
    %1263 = vmatprep.subr.mxu0 0.0
    %1264 = vmatpush1.msra.mxu0 0.0
    %1265 = vmatprep.subr.mxu0 0.0
    %1266 = vmatpush1.msra.mxu0 0.0
    %1267 = vmatprep.subr.mxu0 0.0
    %1268 = vmatpush1.msra.mxu0 0.0
    %1269 = vmatprep.subr.mxu0 0.0
    %1270 = vmatpush1.msra.mxu0 0.0
    %1271 = vmatprep.subr.mxu0 0.0
    %1272 = vmatpush1.msra.mxu0 0.0
    %1273 = vmatprep.subr.mxu0 0.0
    %1274 = vmatpush1.msra.mxu0 0.0
    %1275 = vmatprep.subr.mxu0 0.0
    %1276 = vmatpush1.msra.mxu0 0.0
    %1277 = vmatprep.subr.mxu0 0.0
    %1278 = vmatpush1.msra.mxu0 0.0
    %1279 = vmatprep.subr.mxu0 0.0
    %1280 = vmatpush1.msra.mxu0 0.0
    %1281 = vmatprep.subr.mxu0 0.0
    %1282 = vmatpush1.msra.mxu0 0.0
    %1283 = vmatprep.subr.mxu0 0.0
    %1284 = vmatpush1.msra.mxu0 0.0
    %1285 = vmatprep.subr.mxu0 0.0
    %1286 = vmatpush1.msra.mxu0 0.0
    %1287 = vmatprep.subr.mxu0 0.0
    %1288 = vmatpush1.msra.mxu0 0.0
    %1289 = vmatprep.mubr.f32.mxu0 0.0
    %1290 = vmatmul.mubr.f32.gmra.mrb[0].mxu0 %v1221
    %v1291 = vpop.f32.mrb[0].mxu0
    %v1292 = vadd.f32 %v1177, %v1291
    %v1293 = vpop.f32.mrb[0].mxu0
    %1294 = vmatprep.mubr.f32.mxu0 0.0
    %1295 = vmatmul.mubr.f32.gmra.mrb[0].mxu0 %v1223
    %v1296 = vpop.f32.mrb[0].mxu0
    %v1297 = vadd.f32 %v1177, %v1296
    %v1298 = vpop.f32.mrb[0].mxu0
    %1299 = vdwg.mxu0
    %v1302 = vcombine.high %v1292, %v1292
    %v1304 = vunpack.c.l.s4 1983009808
    %v1305 = vunpack.c.0.s8 %v1304
    %v1306 = vlaneseq
    %v1307 = vshrl.u32 %v1306, 7
    %v1308 = vsub.s32 %v1305, %v1307
    %v1309 = vrot.slane %v1292, %v1308
    %v1311 = vunpack.c.l.s4 1983009808
    %v1312 = vunpack.c.0.s8 %v1311
    %v1313 = vlaneseq
    %v1314 = vshrl.u32 %v1313, 7
    %v1315 = vsub.s32 %v1312, %v1314
    %v1316 = vrot.slane %v1302, %v1315
    %v1317 = vcombine.high %v1309, %v1309
    %v1318 = vcombine.high %v1316, %v1316
    %v1319 = vcombine.high %v1297, %v1297
    %v1321 = vunpack.c.l.s4 1983009808
    %v1322 = vunpack.c.0.s8 %v1321
    %v1323 = vlaneseq
    %v1324 = vshrl.u32 %v1323, 7
    %v1325 = vsub.s32 %v1322, %v1324
    %v1326 = vrot.slane %v1297, %v1325
    %v1328 = vunpack.c.l.s4 1983009808
    %v1329 = vunpack.c.0.s8 %v1328
    %v1330 = vlaneseq
    %v1331 = vshrl.u32 %v1330, 7
    %v1332 = vsub.s32 %v1329, %v1331
    %v1333 = vrot.slane %v1319, %v1332
    %v1334 = vcombine.high %v1326, %v1326
    %v1335 = vcombine.high %v1333, %v1333
    %1344 = vmatprep.subr.mxu0 0.0
    %1345 = vmatpush1.msra.mxu0 %v1164
    %1346 = vmatprep.subr.mxu0 0.0
    %1347 = vmatpush1.msra.mxu0 %v1165
    %1348 = vmatprep.subr.mxu0 0.0
    %1349 = vmatpush1.msra.mxu0 %v1166
    %1350 = vmatprep.subr.mxu0 0.0
    %1351 = vmatpush1.msra.mxu0 %v1167
    %1352 = vmatprep.subr.mxu0 0.0
    %1353 = vmatpush1.msra.mxu0 0.0
    %1354 = vmatprep.subr.mxu0 0.0
    %1355 = vmatpush1.msra.mxu0 0.0
    %1356 = vmatprep.subr.mxu0 0.0
    %1357 = vmatpush1.msra.mxu0 0.0
    %1358 = vmatprep.subr.mxu0 0.0
    %1359 = vmatpush1.msra.mxu0 0.0
    %1360 = vmatprep.subr.mxu0 0.0
    %1361 = vmatpush1.msra.mxu0 0.0
    %1362 = vmatprep.subr.mxu0 0.0
    %1363 = vmatpush1.msra.mxu0 0.0
    %1364 = vmatprep.subr.mxu0 0.0
    %1365 = vmatpush1.msra.mxu0 0.0
    %1366 = vmatprep.subr.mxu0 0.0
    %1367 = vmatpush1.msra.mxu0 0.0
    %1368 = vmatprep.subr.mxu0 0.0
    %1369 = vmatpush1.msra.mxu0 0.0
    %1370 = vmatprep.subr.mxu0 0.0
    %1371 = vmatpush1.msra.mxu0 0.0
    %1372 = vmatprep.subr.mxu0 0.0
    %1373 = vmatpush1.msra.mxu0 0.0
    %1374 = vmatprep.subr.mxu0 0.0
    %1375 = vmatpush1.msra.mxu0 0.0
    %1376 = vmatprep.subr.mxu0 0.0
    %1377 = vmatpush1.msra.mxu0 0.0
    %1378 = vmatprep.subr.mxu0 0.0
    %1379 = vmatpush1.msra.mxu0 0.0
    %1380 = vmatprep.subr.mxu0 0.0
    %1381 = vmatpush1.msra.mxu0 0.0
    %1382 = vmatprep.subr.mxu0 0.0
    %1383 = vmatpush1.msra.mxu0 0.0
    %1384 = vmatprep.subr.mxu0 0.0
    %1385 = vmatpush1.msra.mxu0 0.0
    %1386 = vmatprep.subr.mxu0 0.0
    %1387 = vmatpush1.msra.mxu0 0.0
    %1388 = vmatprep.subr.mxu0 0.0
    %1389 = vmatpush1.msra.mxu0 0.0
    %1390 = vmatprep.subr.mxu0 0.0
    %1391 = vmatpush1.msra.mxu0 0.0
    %1392 = vmatprep.subr.mxu0 0.0
    %1393 = vmatpush1.msra.mxu0 0.0
    %1394 = vmatprep.subr.mxu0 0.0
    %1395 = vmatpush1.msra.mxu0 0.0
    %1396 = vmatprep.subr.mxu0 0.0
    %1397 = vmatpush1.msra.mxu0 0.0
    %1398 = vmatprep.subr.mxu0 0.0
    %1399 = vmatpush1.msra.mxu0 0.0
    %1400 = vmatprep.subr.mxu0 0.0
    %1401 = vmatpush1.msra.mxu0 0.0
    %1402 = vmatprep.subr.mxu0 0.0
    %1403 = vmatpush1.msra.mxu0 0.0
    %1404 = vmatprep.subr.mxu0 0.0
    %1405 = vmatpush1.msra.mxu0 0.0
    %1406 = vmatprep.subr.mxu0 0.0
    %1407 = vmatpush1.msra.mxu0 0.0
    %1408 = vmatprep.mubr.f32.mxu0 0.0
    %1409 = vmatmul.mubr.f32.gmra.mrb[0].mxu0 %v276
    %v1410 = vpop.f32.mrb[0].mxu0
    %v1411 = vadd.f32 0.0, %v1410
    %v1412 = vpop.f32.mrb[0].mxu0
    %1413 = vdwg.mxu0
    %v1414 = vadd.f32 %v1309, %v1411
    %v1415 = vxor.u32 %v1414, 2147483648
    %v1416 = vmul.f32 %v1415, 1.442695
    %v1417 = vpow.pop %v1416
    %v1418 = vadd.f32 %v1417, 1.0
    %v1419 = vrcp.pop %v1418
    %v1420 = vmul.f32 1.0, %v1419
    %v1421 = vtanh.pop %v1414
    %v1422 = vmul.f32 %v1420, 0.0
    %1424 = vrot.lane.b32.xlu0 %v1421, 64
    %v1425 = vpop.permute.xlu0 %1424
    %v1427 = vmul.f32 %v1420, %v1425
    %1429 = vrot.lane.b32.xlu0 %v1427, 32
    %v1430 = vpop.permute.xlu0 %1429
    %v1432 = vadd.f32 %v1422, %v1430
    %v1433 = vtanh.pop %v1432
    %1435 = vrot.lane.b32.xlu0 %v1433, 64
    %v1436 = vpop.permute.xlu0 %1435
    %v1438 = vmul.f32 %v1420, %v1436
    %v1441 = vunpack.c.l.s4 1983009808
    %v1442 = vunpack.c.0.s8 %v1441
    %v1443 = vlaneseq
    %v1444 = vshrl.u32 %v1443, 7
    %v1445 = vsub.s32 %v1442, %v1444
    %v1446 = vrot.slane %v1438, %v1445
    %1447 = vrot.lane.b32.xlu0 %v1446, 32
    %v1448 = vpop.permute.xlu0 %1447
    %1450 = vst.msk [vmem:[#allocation2] sm:$0x3] %vm384, %v1448
    %v1451 = vsel %vm274, %v1448, 0
    %1453 = vmatprep.subr.mxu0 0.0
    %1454 = vmatpush1.msra.mxu0 %v1164
    %1455 = vmatprep.subr.mxu0 0.0
    %1456 = vmatpush1.msra.mxu0 %v1165
    %1457 = vmatprep.subr.mxu0 0.0
    %1458 = vmatpush1.msra.mxu0 %v1166
    %1459 = vmatprep.subr.mxu0 0.0
    %1460 = vmatpush1.msra.mxu0 %v1167
    %1461 = vmatprep.subr.mxu0 0.0
    %1462 = vmatpush1.msra.mxu0 0.0
    %1463 = vmatprep.subr.mxu0 0.0
    %1464 = vmatpush1.msra.mxu0 0.0
    %1465 = vmatprep.subr.mxu0 0.0
    %1466 = vmatpush1.msra.mxu0 0.0
    %1467 = vmatprep.subr.mxu0 0.0
    %1468 = vmatpush1.msra.mxu0 0.0
    %1469 = vmatprep.subr.mxu0 0.0
    %1470 = vmatpush1.msra.mxu0 0.0
    %1471 = vmatprep.subr.mxu0 0.0
    %1472 = vmatpush1.msra.mxu0 0.0
    %1473 = vmatprep.subr.mxu0 0.0
    %1474 = vmatpush1.msra.mxu0 0.0
    %1475 = vmatprep.subr.mxu0 0.0
    %1476 = vmatpush1.msra.mxu0 0.0
    %1477 = vmatprep.subr.mxu0 0.0
    %1478 = vmatpush1.msra.mxu0 0.0
    %1479 = vmatprep.subr.mxu0 0.0
    %1480 = vmatpush1.msra.mxu0 0.0
    %1481 = vmatprep.subr.mxu0 0.0
    %1482 = vmatpush1.msra.mxu0 0.0
    %1483 = vmatprep.subr.mxu0 0.0
    %1484 = vmatpush1.msra.mxu0 0.0
    %1485 = vmatprep.subr.mxu0 0.0
    %1486 = vmatpush1.msra.mxu0 0.0
    %1487 = vmatprep.subr.mxu0 0.0
    %1488 = vmatpush1.msra.mxu0 0.0
    %1489 = vmatprep.subr.mxu0 0.0
    %1490 = vmatpush1.msra.mxu0 0.0
    %1491 = vmatprep.subr.mxu0 0.0
    %1492 = vmatpush1.msra.mxu0 0.0
    %1493 = vmatprep.subr.mxu0 0.0
    %1494 = vmatpush1.msra.mxu0 0.0
    %1495 = vmatprep.subr.mxu0 0.0
    %1496 = vmatpush1.msra.mxu0 0.0
    %1497 = vmatprep.subr.mxu0 0.0
    %1498 = vmatpush1.msra.mxu0 0.0
    %1499 = vmatprep.subr.mxu0 0.0
    %1500 = vmatpush1.msra.mxu0 0.0
    %1501 = vmatprep.subr.mxu0 0.0
    %1502 = vmatpush1.msra.mxu0 0.0
    %1503 = vmatprep.subr.mxu0 0.0
    %1504 = vmatpush1.msra.mxu0 0.0
    %1505 = vmatprep.subr.mxu0 0.0
    %1506 = vmatpush1.msra.mxu0 0.0
    %1507 = vmatprep.subr.mxu0 0.0
    %1508 = vmatpush1.msra.mxu0 0.0
    %1509 = vmatprep.subr.mxu0 0.0
    %1510 = vmatpush1.msra.mxu0 0.0
    %1511 = vmatprep.subr.mxu0 0.0
    %1512 = vmatpush1.msra.mxu0 0.0
    %1513 = vmatprep.subr.mxu0 0.0
    %1514 = vmatpush1.msra.mxu0 0.0
    %1515 = vmatprep.subr.mxu0 0.0
    %1516 = vmatpush1.msra.mxu0 0.0
    %1517 = vmatprep.mubr.f32.mxu0 0.0
    %1518 = vmatmul.mubr.f32.gmra.mrb[0].mxu0 %v1451
    %v1519 = vpop.f32.mrb[0].mxu0
    %v1520 = vadd.f32 0.0, %v1519
    %v1521 = vpop.f32.mrb[0].mxu0
    %1522 = vdwg.mxu0
    %v1523 = vadd.f32 %v1317, %v1520
    %v1524 = vxor.u32 %v1523, 2147483648
    %v1525 = vmul.f32 %v1524, 1.442695
    %v1526 = vpow.pop %v1525
    %v1527 = vadd.f32 %v1526, 1.0
    %v1528 = vrcp.pop %v1527
    %v1529 = vmul.f32 1.0, %v1528
    %v1530 = vtanh.pop %v1523
    %v1531 = vmul.f32 %v1529, %v1432
    %1533 = vrot.lane.b32.xlu0 %v1530, 64
    %v1534 = vpop.permute.xlu0 %1533
    %v1536 = vmul.f32 %v1529, %v1534
    %1538 = vrot.lane.b32.xlu0 %v1536, 32
    %v1539 = vpop.permute.xlu0 %1538
    %v1541 = vadd.f32 %v1531, %v1539
    %v1542 = vtanh.pop %v1541
    %1544 = vrot.lane.b32.xlu0 %v1542, 64
    %v1545 = vpop.permute.xlu0 %1544
    %v1547 = vmul.f32 %v1529, %v1545
    %v1550 = vunpack.c.l.s4 1983009808
    %v1551 = vunpack.c.0.s8 %v1550
    %v1552 = vlaneseq
    %v1553 = vshrl.u32 %v1552, 7
    %v1554 = vsub.s32 %v1551, %v1553
    %v1555 = vrot.slane %v1547, %v1554
    %1556 = vrot.lane.b32.xlu0 %v1555, 32
    %v1557 = vpop.permute.xlu0 %1556
    %1559 = vst.msk [vmem:[%s494] sm:$0x3] %vm384, %v1557
    %v1560 = vsel %vm274, %v1557, 0
    %1562 = vmatprep.subr.mxu0 0.0
    %1563 = vmatpush1.msra.mxu0 %v1164
    %1564 = vmatprep.subr.mxu0 0.0
    %1565 = vmatpush1.msra.mxu0 %v1165
    %1566 = vmatprep.subr.mxu0 0.0
    %1567 = vmatpush1.msra.mxu0 %v1166
    %1568 = vmatprep.subr.mxu0 0.0
    %1569 = vmatpush1.msra.mxu0 %v1167
    %1570 = vmatprep.subr.mxu0 0.0
    %1571 = vmatpush1.msra.mxu0 0.0
    %1572 = vmatprep.subr.mxu0 0.0
    %1573 = vmatpush1.msra.mxu0 0.0
    %1574 = vmatprep.subr.mxu0 0.0
    %1575 = vmatpush1.msra.mxu0 0.0
    %1576 = vmatprep.subr.mxu0 0.0
    %1577 = vmatpush1.msra.mxu0 0.0
    %1578 = vmatprep.subr.mxu0 0.0
    %1579 = vmatpush1.msra.mxu0 0.0
    %1580 = vmatprep.subr.mxu0 0.0
    %1581 = vmatpush1.msra.mxu0 0.0
    %1582 = vmatprep.subr.mxu0 0.0
    %1583 = vmatpush1.msra.mxu0 0.0
    %1584 = vmatprep.subr.mxu0 0.0
    %1585 = vmatpush1.msra.mxu0 0.0
    %1586 = vmatprep.subr.mxu0 0.0
    %1587 = vmatpush1.msra.mxu0 0.0
    %1588 = vmatprep.subr.mxu0 0.0
    %1589 = vmatpush1.msra.mxu0 0.0
    %1590 = vmatprep.subr.mxu0 0.0
    %1591 = vmatpush1.msra.mxu0 0.0
    %1592 = vmatprep.subr.mxu0 0.0
    %1593 = vmatpush1.msra.mxu0 0.0
    %1594 = vmatprep.subr.mxu0 0.0
    %1595 = vmatpush1.msra.mxu0 0.0
    %1596 = vmatprep.subr.mxu0 0.0
    %1597 = vmatpush1.msra.mxu0 0.0
    %1598 = vmatprep.subr.mxu0 0.0
    %1599 = vmatpush1.msra.mxu0 0.0
    %1600 = vmatprep.subr.mxu0 0.0
    %1601 = vmatpush1.msra.mxu0 0.0
    %1602 = vmatprep.subr.mxu0 0.0
    %1603 = vmatpush1.msra.mxu0 0.0
    %1604 = vmatprep.subr.mxu0 0.0
    %1605 = vmatpush1.msra.mxu0 0.0
    %1606 = vmatprep.subr.mxu0 0.0
    %1607 = vmatpush1.msra.mxu0 0.0
    %1608 = vmatprep.subr.mxu0 0.0
    %1609 = vmatpush1.msra.mxu0 0.0
    %1610 = vmatprep.subr.mxu0 0.0
    %1611 = vmatpush1.msra.mxu0 0.0
    %1612 = vmatprep.subr.mxu0 0.0
    %1613 = vmatpush1.msra.mxu0 0.0
    %1614 = vmatprep.subr.mxu0 0.0
    %1615 = vmatpush1.msra.mxu0 0.0
    %1616 = vmatprep.subr.mxu0 0.0
    %1617 = vmatpush1.msra.mxu0 0.0
    %1618 = vmatprep.subr.mxu0 0.0
    %1619 = vmatpush1.msra.mxu0 0.0
    %1620 = vmatprep.subr.mxu0 0.0
    %1621 = vmatpush1.msra.mxu0 0.0
    %1622 = vmatprep.subr.mxu0 0.0
    %1623 = vmatpush1.msra.mxu0 0.0
    %1624 = vmatprep.subr.mxu0 0.0
    %1625 = vmatpush1.msra.mxu0 0.0
    %1626 = vmatprep.mubr.f32.mxu0 0.0
    %1627 = vmatmul.mubr.f32.gmra.mrb[0].mxu0 %v1560
    %v1628 = vpop.f32.mrb[0].mxu0
    %v1629 = vadd.f32 0.0, %v1628
    %v1630 = vpop.f32.mrb[0].mxu0
    %1631 = vdwg.mxu0
    %v1632 = vadd.f32 %v1316, %v1629
    %v1633 = vxor.u32 %v1632, 2147483648
    %v1634 = vmul.f32 %v1633, 1.442695
    %v1635 = vpow.pop %v1634
    %v1636 = vadd.f32 %v1635, 1.0
    %v1637 = vrcp.pop %v1636
    %v1638 = vmul.f32 1.0, %v1637
    %v1639 = vtanh.pop %v1632
    %v1640 = vmul.f32 %v1638, %v1541
    %1642 = vrot.lane.b32.xlu0 %v1639, 64
    %v1643 = vpop.permute.xlu0 %1642
    %v1645 = vmul.f32 %v1638, %v1643
    %1647 = vrot.lane.b32.xlu0 %v1645, 32
    %v1648 = vpop.permute.xlu0 %1647
    %v1650 = vadd.f32 %v1640, %v1648
    %v1651 = vtanh.pop %v1650
    %1653 = vrot.lane.b32.xlu0 %v1651, 64
    %v1654 = vpop.permute.xlu0 %1653
    %v1656 = vmul.f32 %v1638, %v1654
    %v1659 = vunpack.c.l.s4 1983009808
    %v1660 = vunpack.c.0.s8 %v1659
    %v1661 = vlaneseq
    %v1662 = vshrl.u32 %v1661, 7
    %v1663 = vsub.s32 %v1660, %v1662
    %v1664 = vrot.slane %v1656, %v1663
    %1665 = vrot.lane.b32.xlu0 %v1664, 32
    %v1666 = vpop.permute.xlu0 %1665
    %1668 = vst.msk [vmem:[%s604] sm:$0x3] %vm384, %v1666
    %v1669 = vsel %vm274, %v1666, 0
    %1671 = vmatprep.subr.mxu0 0.0
    %1672 = vmatpush1.msra.mxu0 %v1164
    %1673 = vmatprep.subr.mxu0 0.0
    %1674 = vmatpush1.msra.mxu0 %v1165
    %1675 = vmatprep.subr.mxu0 0.0
    %1676 = vmatpush1.msra.mxu0 %v1166
    %1677 = vmatprep.subr.mxu0 0.0
    %1678 = vmatpush1.msra.mxu0 %v1167
    %1679 = vmatprep.subr.mxu0 0.0
    %1680 = vmatpush1.msra.mxu0 0.0
    %1681 = vmatprep.subr.mxu0 0.0
    %1682 = vmatpush1.msra.mxu0 0.0
    %1683 = vmatprep.subr.mxu0 0.0
    %1684 = vmatpush1.msra.mxu0 0.0
    %1685 = vmatprep.subr.mxu0 0.0
    %1686 = vmatpush1.msra.mxu0 0.0
    %1687 = vmatprep.subr.mxu0 0.0
    %1688 = vmatpush1.msra.mxu0 0.0
    %1689 = vmatprep.subr.mxu0 0.0
    %1690 = vmatpush1.msra.mxu0 0.0
    %1691 = vmatprep.subr.mxu0 0.0
    %1692 = vmatpush1.msra.mxu0 0.0
    %1693 = vmatprep.subr.mxu0 0.0
    %1694 = vmatpush1.msra.mxu0 0.0
    %1695 = vmatprep.subr.mxu0 0.0
    %1696 = vmatpush1.msra.mxu0 0.0
    %1697 = vmatprep.subr.mxu0 0.0
    %1698 = vmatpush1.msra.mxu0 0.0
    %1699 = vmatprep.subr.mxu0 0.0
    %1700 = vmatpush1.msra.mxu0 0.0
    %1701 = vmatprep.subr.mxu0 0.0
    %1702 = vmatpush1.msra.mxu0 0.0
    %1703 = vmatprep.subr.mxu0 0.0
    %1704 = vmatpush1.msra.mxu0 0.0
    %1705 = vmatprep.subr.mxu0 0.0
    %1706 = vmatpush1.msra.mxu0 0.0
    %1707 = vmatprep.subr.mxu0 0.0
    %1708 = vmatpush1.msra.mxu0 0.0
    %1709 = vmatprep.subr.mxu0 0.0
    %1710 = vmatpush1.msra.mxu0 0.0
    %1711 = vmatprep.subr.mxu0 0.0
    %1712 = vmatpush1.msra.mxu0 0.0
    %1713 = vmatprep.subr.mxu0 0.0
    %1714 = vmatpush1.msra.mxu0 0.0
    %1715 = vmatprep.subr.mxu0 0.0
    %1716 = vmatpush1.msra.mxu0 0.0
    %1717 = vmatprep.subr.mxu0 0.0
    %1718 = vmatpush1.msra.mxu0 0.0
    %1719 = vmatprep.subr.mxu0 0.0
    %1720 = vmatpush1.msra.mxu0 0.0
    %1721 = vmatprep.subr.mxu0 0.0
    %1722 = vmatpush1.msra.mxu0 0.0
    %1723 = vmatprep.subr.mxu0 0.0
    %1724 = vmatpush1.msra.mxu0 0.0
    %1725 = vmatprep.subr.mxu0 0.0
    %1726 = vmatpush1.msra.mxu0 0.0
    %1727 = vmatprep.subr.mxu0 0.0
    %1728 = vmatpush1.msra.mxu0 0.0
    %1729 = vmatprep.subr.mxu0 0.0
    %1730 = vmatpush1.msra.mxu0 0.0
    %1731 = vmatprep.subr.mxu0 0.0
    %1732 = vmatpush1.msra.mxu0 0.0
    %1733 = vmatprep.subr.mxu0 0.0
    %1734 = vmatpush1.msra.mxu0 0.0
    %1735 = vmatprep.mubr.f32.mxu0 0.0
    %1736 = vmatmul.mubr.f32.gmra.mrb[0].mxu0 %v1669
    %v1737 = vpop.f32.mrb[0].mxu0
    %v1738 = vadd.f32 0.0, %v1737
    %v1739 = vpop.f32.mrb[0].mxu0
    %1740 = vdwg.mxu0
    %v1741 = vadd.f32 %v1318, %v1738
    %v1742 = vxor.u32 %v1741, 2147483648
    %v1743 = vmul.f32 %v1742, 1.442695
    %v1744 = vpow.pop %v1743
    %v1745 = vadd.f32 %v1744, 1.0
    %v1746 = vrcp.pop %v1745
    %v1747 = vmul.f32 1.0, %v1746
    %v1748 = vtanh.pop %v1741
    %v1749 = vmul.f32 %v1747, %v1650
    %1751 = vrot.lane.b32.xlu0 %v1748, 64
    %v1752 = vpop.permute.xlu0 %1751
    %v1754 = vmul.f32 %v1747, %v1752
    %1756 = vrot.lane.b32.xlu0 %v1754, 32
    %v1757 = vpop.permute.xlu0 %1756
    %v1759 = vadd.f32 %v1749, %v1757
    %v1760 = vtanh.pop %v1759
    %1762 = vrot.lane.b32.xlu0 %v1760, 64
    %v1763 = vpop.permute.xlu0 %1762
    %v1765 = vmul.f32 %v1747, %v1763
    %v1768 = vunpack.c.l.s4 1983009808
    %v1769 = vunpack.c.0.s8 %v1768
    %v1770 = vlaneseq
    %v1771 = vshrl.u32 %v1770, 7
    %v1772 = vsub.s32 %v1769, %v1771
    %v1773 = vrot.slane %v1765, %v1772
    %1774 = vrot.lane.b32.xlu0 %v1773, 32
    %v1775 = vpop.permute.xlu0 %1774
    %1777 = vst.msk [vmem:[%s714] sm:$0x3] %vm384, %v1775
    %v1778 = vsel %vm274, %v1775, 0
    %1780 = vmatprep.subr.mxu0 0.0
    %1781 = vmatpush1.msra.mxu0 %v1164
    %1782 = vmatprep.subr.mxu0 0.0
    %1783 = vmatpush1.msra.mxu0 %v1165
    %1784 = vmatprep.subr.mxu0 0.0
    %1785 = vmatpush1.msra.mxu0 %v1166
    %1786 = vmatprep.subr.mxu0 0.0
    %1787 = vmatpush1.msra.mxu0 %v1167
    %1788 = vmatprep.subr.mxu0 0.0
    %1789 = vmatpush1.msra.mxu0 0.0
    %1790 = vmatprep.subr.mxu0 0.0
    %1791 = vmatpush1.msra.mxu0 0.0
    %1792 = vmatprep.subr.mxu0 0.0
    %1793 = vmatpush1.msra.mxu0 0.0
    %1794 = vmatprep.subr.mxu0 0.0
    %1795 = vmatpush1.msra.mxu0 0.0
    %1796 = vmatprep.subr.mxu0 0.0
    %1797 = vmatpush1.msra.mxu0 0.0
    %1798 = vmatprep.subr.mxu0 0.0
    %1799 = vmatpush1.msra.mxu0 0.0
    %1800 = vmatprep.subr.mxu0 0.0
    %1801 = vmatpush1.msra.mxu0 0.0
    %1802 = vmatprep.subr.mxu0 0.0
    %1803 = vmatpush1.msra.mxu0 0.0
    %1804 = vmatprep.subr.mxu0 0.0
    %1805 = vmatpush1.msra.mxu0 0.0
    %1806 = vmatprep.subr.mxu0 0.0
    %1807 = vmatpush1.msra.mxu0 0.0
    %1808 = vmatprep.subr.mxu0 0.0
    %1809 = vmatpush1.msra.mxu0 0.0
    %1810 = vmatprep.subr.mxu0 0.0
    %1811 = vmatpush1.msra.mxu0 0.0
    %1812 = vmatprep.subr.mxu0 0.0
    %1813 = vmatpush1.msra.mxu0 0.0
    %1814 = vmatprep.subr.mxu0 0.0
    %1815 = vmatpush1.msra.mxu0 0.0
    %1816 = vmatprep.subr.mxu0 0.0
    %1817 = vmatpush1.msra.mxu0 0.0
    %1818 = vmatprep.subr.mxu0 0.0
    %1819 = vmatpush1.msra.mxu0 0.0
    %1820 = vmatprep.subr.mxu0 0.0
    %1821 = vmatpush1.msra.mxu0 0.0
    %1822 = vmatprep.subr.mxu0 0.0
    %1823 = vmatpush1.msra.mxu0 0.0
    %1824 = vmatprep.subr.mxu0 0.0
    %1825 = vmatpush1.msra.mxu0 0.0
    %1826 = vmatprep.subr.mxu0 0.0
    %1827 = vmatpush1.msra.mxu0 0.0
    %1828 = vmatprep.subr.mxu0 0.0
    %1829 = vmatpush1.msra.mxu0 0.0
    %1830 = vmatprep.subr.mxu0 0.0
    %1831 = vmatpush1.msra.mxu0 0.0
    %1832 = vmatprep.subr.mxu0 0.0
    %1833 = vmatpush1.msra.mxu0 0.0
    %1834 = vmatprep.subr.mxu0 0.0
    %1835 = vmatpush1.msra.mxu0 0.0
    %1836 = vmatprep.subr.mxu0 0.0
    %1837 = vmatpush1.msra.mxu0 0.0
    %1838 = vmatprep.subr.mxu0 0.0
    %1839 = vmatpush1.msra.mxu0 0.0
    %1840 = vmatprep.subr.mxu0 0.0
    %1841 = vmatpush1.msra.mxu0 0.0
    %1842 = vmatprep.subr.mxu0 0.0
    %1843 = vmatpush1.msra.mxu0 0.0
    %1844 = vmatprep.mubr.f32.mxu0 0.0
    %1845 = vmatmul.mubr.f32.gmra.mrb[0].mxu0 %v1778
    %v1846 = vpop.f32.mrb[0].mxu0
    %v1847 = vadd.f32 0.0, %v1846
    %v1848 = vpop.f32.mrb[0].mxu0
    %1849 = vdwg.mxu0
    %v1850 = vadd.f32 %v1326, %v1847
    %v1851 = vxor.u32 %v1850, 2147483648
    %v1852 = vmul.f32 %v1851, 1.442695
    %v1853 = vpow.pop %v1852
    %v1854 = vadd.f32 %v1853, 1.0
    %v1855 = vrcp.pop %v1854
    %v1856 = vmul.f32 1.0, %v1855
    %v1857 = vtanh.pop %v1850
    %v1858 = vmul.f32 %v1856, %v1759
    %1860 = vrot.lane.b32.xlu0 %v1857, 64
    %v1861 = vpop.permute.xlu0 %1860
    %v1863 = vmul.f32 %v1856, %v1861
    %1865 = vrot.lane.b32.xlu0 %v1863, 32
    %v1866 = vpop.permute.xlu0 %1865
    %v1868 = vadd.f32 %v1858, %v1866
    %v1869 = vtanh.pop %v1868
    %1871 = vrot.lane.b32.xlu0 %v1869, 64
    %v1872 = vpop.permute.xlu0 %1871
    %v1874 = vmul.f32 %v1856, %v1872
    %v1877 = vunpack.c.l.s4 1983009808
    %v1878 = vunpack.c.0.s8 %v1877
    %v1879 = vlaneseq
    %v1880 = vshrl.u32 %v1879, 7
    %v1881 = vsub.s32 %v1878, %v1880
    %v1882 = vrot.slane %v1874, %v1881
    %1883 = vrot.lane.b32.xlu0 %v1882, 32
    %v1884 = vpop.permute.xlu0 %1883
    %1886 = vst.msk [vmem:[%s824] sm:$0x3] %vm384, %v1884
    %v1887 = vsel %vm274, %v1884, 0
    %1889 = vmatprep.subr.mxu0 0.0
    %1890 = vmatpush1.msra.mxu0 %v1164
    %1891 = vmatprep.subr.mxu0 0.0
    %1892 = vmatpush1.msra.mxu0 %v1165
    %1893 = vmatprep.subr.mxu0 0.0
    %1894 = vmatpush1.msra.mxu0 %v1166
    %1895 = vmatprep.subr.mxu0 0.0
    %1896 = vmatpush1.msra.mxu0 %v1167
    %1897 = vmatprep.subr.mxu0 0.0
    %1898 = vmatpush1.msra.mxu0 0.0
    %1899 = vmatprep.subr.mxu0 0.0
    %1900 = vmatpush1.msra.mxu0 0.0
    %1901 = vmatprep.subr.mxu0 0.0
    %1902 = vmatpush1.msra.mxu0 0.0
    %1903 = vmatprep.subr.mxu0 0.0
    %1904 = vmatpush1.msra.mxu0 0.0
    %1905 = vmatprep.subr.mxu0 0.0
    %1906 = vmatpush1.msra.mxu0 0.0
    %1907 = vmatprep.subr.mxu0 0.0
    %1908 = vmatpush1.msra.mxu0 0.0
    %1909 = vmatprep.subr.mxu0 0.0
    %1910 = vmatpush1.msra.mxu0 0.0
    %1911 = vmatprep.subr.mxu0 0.0
    %1912 = vmatpush1.msra.mxu0 0.0
    %1913 = vmatprep.subr.mxu0 0.0
    %1914 = vmatpush1.msra.mxu0 0.0
    %1915 = vmatprep.subr.mxu0 0.0
    %1916 = vmatpush1.msra.mxu0 0.0
    %1917 = vmatprep.subr.mxu0 0.0
    %1918 = vmatpush1.msra.mxu0 0.0
    %1919 = vmatprep.subr.mxu0 0.0
    %1920 = vmatpush1.msra.mxu0 0.0
    %1921 = vmatprep.subr.mxu0 0.0
    %1922 = vmatpush1.msra.mxu0 0.0
    %1923 = vmatprep.subr.mxu0 0.0
    %1924 = vmatpush1.msra.mxu0 0.0
    %1925 = vmatprep.subr.mxu0 0.0
    %1926 = vmatpush1.msra.mxu0 0.0
    %1927 = vmatprep.subr.mxu0 0.0
    %1928 = vmatpush1.msra.mxu0 0.0
    %1929 = vmatprep.subr.mxu0 0.0
    %1930 = vmatpush1.msra.mxu0 0.0
    %1931 = vmatprep.subr.mxu0 0.0
    %1932 = vmatpush1.msra.mxu0 0.0
    %1933 = vmatprep.subr.mxu0 0.0
    %1934 = vmatpush1.msra.mxu0 0.0
    %1935 = vmatprep.subr.mxu0 0.0
    %1936 = vmatpush1.msra.mxu0 0.0
    %1937 = vmatprep.subr.mxu0 0.0
    %1938 = vmatpush1.msra.mxu0 0.0
    %1939 = vmatprep.subr.mxu0 0.0
    %1940 = vmatpush1.msra.mxu0 0.0
    %1941 = vmatprep.subr.mxu0 0.0
    %1942 = vmatpush1.msra.mxu0 0.0
    %1943 = vmatprep.subr.mxu0 0.0
    %1944 = vmatpush1.msra.mxu0 0.0
    %1945 = vmatprep.subr.mxu0 0.0
    %1946 = vmatpush1.msra.mxu0 0.0
    %1947 = vmatprep.subr.mxu0 0.0
    %1948 = vmatpush1.msra.mxu0 0.0
    %1949 = vmatprep.subr.mxu0 0.0
    %1950 = vmatpush1.msra.mxu0 0.0
    %1951 = vmatprep.subr.mxu0 0.0
    %1952 = vmatpush1.msra.mxu0 0.0
    %1953 = vmatprep.mubr.f32.mxu0 0.0
    %1954 = vmatmul.mubr.f32.gmra.mrb[0].mxu0 %v1887
    %v1955 = vpop.f32.mrb[0].mxu0
    %v1956 = vadd.f32 0.0, %v1955
    %v1957 = vpop.f32.mrb[0].mxu0
    %1958 = vdwg.mxu0
    %v1959 = vadd.f32 %v1334, %v1956
    %v1960 = vxor.u32 %v1959, 2147483648
    %v1961 = vmul.f32 %v1960, 1.442695
    %v1962 = vpow.pop %v1961
    %v1963 = vadd.f32 %v1962, 1.0
    %v1964 = vrcp.pop %v1963
    %v1965 = vmul.f32 1.0, %v1964
    %v1966 = vtanh.pop %v1959
    %v1967 = vmul.f32 %v1965, %v1868
    %1969 = vrot.lane.b32.xlu0 %v1966, 64
    %v1970 = vpop.permute.xlu0 %1969
    %v1972 = vmul.f32 %v1965, %v1970
    %1974 = vrot.lane.b32.xlu0 %v1972, 32
    %v1975 = vpop.permute.xlu0 %1974
    %v1977 = vadd.f32 %v1967, %v1975
    %v1978 = vtanh.pop %v1977
    %1980 = vrot.lane.b32.xlu0 %v1978, 64
    %v1981 = vpop.permute.xlu0 %1980
    %v1983 = vmul.f32 %v1965, %v1981
    %v1986 = vunpack.c.l.s4 1983009808
    %v1987 = vunpack.c.0.s8 %v1986
    %v1988 = vlaneseq
    %v1989 = vshrl.u32 %v1988, 7
    %v1990 = vsub.s32 %v1987, %v1989
    %v1991 = vrot.slane %v1983, %v1990
    %1992 = vrot.lane.b32.xlu0 %v1991, 32
    %v1993 = vpop.permute.xlu0 %1992
    %1995 = vst.msk [vmem:[%s934] sm:$0x3] %vm384, %v1993
    %v1996 = vsel %vm274, %v1993, 0
    %1998 = vmatprep.subr.mxu0 0.0
    %1999 = vmatpush1.msra.mxu0 %v1164
    %2000 = vmatprep.subr.mxu0 0.0
    %2001 = vmatpush1.msra.mxu0 %v1165
    %2002 = vmatprep.subr.mxu0 0.0
    %2003 = vmatpush1.msra.mxu0 %v1166
    %2004 = vmatprep.subr.mxu0 0.0
    %2005 = vmatpush1.msra.mxu0 %v1167
    %2006 = vmatprep.subr.mxu0 0.0
    %2007 = vmatpush1.msra.mxu0 0.0
    %2008 = vmatprep.subr.mxu0 0.0
    %2009 = vmatpush1.msra.mxu0 0.0
    %2010 = vmatprep.subr.mxu0 0.0
    %2011 = vmatpush1.msra.mxu0 0.0
    %2012 = vmatprep.subr.mxu0 0.0
    %2013 = vmatpush1.msra.mxu0 0.0
    %2014 = vmatprep.subr.mxu0 0.0
    %2015 = vmatpush1.msra.mxu0 0.0
    %2016 = vmatprep.subr.mxu0 0.0
    %2017 = vmatpush1.msra.mxu0 0.0
    %2018 = vmatprep.subr.mxu0 0.0
    %2019 = vmatpush1.msra.mxu0 0.0
    %2020 = vmatprep.subr.mxu0 0.0
    %2021 = vmatpush1.msra.mxu0 0.0
    %2022 = vmatprep.subr.mxu0 0.0
    %2023 = vmatpush1.msra.mxu0 0.0
    %2024 = vmatprep.subr.mxu0 0.0
    %2025 = vmatpush1.msra.mxu0 0.0
    %2026 = vmatprep.subr.mxu0 0.0
    %2027 = vmatpush1.msra.mxu0 0.0
    %2028 = vmatprep.subr.mxu0 0.0
    %2029 = vmatpush1.msra.mxu0 0.0
    %2030 = vmatprep.subr.mxu0 0.0
    %2031 = vmatpush1.msra.mxu0 0.0
    %2032 = vmatprep.subr.mxu0 0.0
    %2033 = vmatpush1.msra.mxu0 0.0
    %2034 = vmatprep.subr.mxu0 0.0
    %2035 = vmatpush1.msra.mxu0 0.0
    %2036 = vmatprep.subr.mxu0 0.0
    %2037 = vmatpush1.msra.mxu0 0.0
    %2038 = vmatprep.subr.mxu0 0.0
    %2039 = vmatpush1.msra.mxu0 0.0
    %2040 = vmatprep.subr.mxu0 0.0
    %2041 = vmatpush1.msra.mxu0 0.0
    %2042 = vmatprep.subr.mxu0 0.0
    %2043 = vmatpush1.msra.mxu0 0.0
    %2044 = vmatprep.subr.mxu0 0.0
    %2045 = vmatpush1.msra.mxu0 0.0
    %2046 = vmatprep.subr.mxu0 0.0
    %2047 = vmatpush1.msra.mxu0 0.0
    %2048 = vmatprep.subr.mxu0 0.0
    %2049 = vmatpush1.msra.mxu0 0.0
    %2050 = vmatprep.subr.mxu0 0.0
    %2051 = vmatpush1.msra.mxu0 0.0
    %2052 = vmatprep.subr.mxu0 0.0
    %2053 = vmatpush1.msra.mxu0 0.0
    %2054 = vmatprep.subr.mxu0 0.0
    %2055 = vmatpush1.msra.mxu0 0.0
    %2056 = vmatprep.subr.mxu0 0.0
    %2057 = vmatpush1.msra.mxu0 0.0
    %2058 = vmatprep.subr.mxu0 0.0
    %2059 = vmatpush1.msra.mxu0 0.0
    %2060 = vmatprep.subr.mxu0 0.0
    %2061 = vmatpush1.msra.mxu0 0.0
    %2062 = vmatprep.mubr.f32.mxu0 0.0
    %2063 = vmatmul.mubr.f32.gmra.mrb[0].mxu0 %v1996
    %v2064 = vpop.f32.mrb[0].mxu0
    %v2065 = vadd.f32 0.0, %v2064
    %v2066 = vpop.f32.mrb[0].mxu0
    %2067 = vdwg.mxu0
    %v2068 = vadd.f32 %v1333, %v2065
    %v2069 = vxor.u32 %v2068, 2147483648
    %v2070 = vmul.f32 %v2069, 1.442695
    %v2071 = vpow.pop %v2070
    %v2072 = vadd.f32 %v2071, 1.0
    %v2073 = vrcp.pop %v2072
    %v2074 = vmul.f32 1.0, %v2073
    %v2075 = vtanh.pop %v2068
    %v2076 = vmul.f32 %v2074, %v1977
    %2078 = vrot.lane.b32.xlu0 %v2075, 64
    %v2079 = vpop.permute.xlu0 %2078
    %v2081 = vmul.f32 %v2074, %v2079
    %2083 = vrot.lane.b32.xlu0 %v2081, 32
    %v2084 = vpop.permute.xlu0 %2083
    %v2086 = vadd.f32 %v2076, %v2084
    %v2087 = vtanh.pop %v2086
    %2089 = vrot.lane.b32.xlu0 %v2087, 64
    %v2090 = vpop.permute.xlu0 %2089
    %v2092 = vmul.f32 %v2074, %v2090
    %v2095 = vunpack.c.l.s4 1983009808
    %v2096 = vunpack.c.0.s8 %v2095
    %v2097 = vlaneseq
    %v2098 = vshrl.u32 %v2097, 7
    %v2099 = vsub.s32 %v2096, %v2098
    %v2100 = vrot.slane %v2092, %v2099
    %2101 = vrot.lane.b32.xlu0 %v2100, 32
    %v2102 = vpop.permute.xlu0 %2101
    %2104 = vst.msk [vmem:[%s1044] sm:$0x3] %vm384, %v2102
    %v2105 = vsel %vm274, %v2102, 0
    %2107 = vmatprep.subr.mxu0 0.0
    %2108 = vmatpush1.msra.mxu0 %v1164
    %2109 = vmatprep.subr.mxu0 0.0
    %2110 = vmatpush1.msra.mxu0 %v1165
    %2111 = vmatprep.subr.mxu0 0.0
    %2112 = vmatpush1.msra.mxu0 %v1166
    %2113 = vmatprep.subr.mxu0 0.0
    %2114 = vmatpush1.msra.mxu0 %v1167
    %2115 = vmatprep.subr.mxu0 0.0
    %2116 = vmatpush1.msra.mxu0 0.0
    %2117 = vmatprep.subr.mxu0 0.0
    %2118 = vmatpush1.msra.mxu0 0.0
    %2119 = vmatprep.subr.mxu0 0.0
    %2120 = vmatpush1.msra.mxu0 0.0
    %2121 = vmatprep.subr.mxu0 0.0
    %2122 = vmatpush1.msra.mxu0 0.0
    %2123 = vmatprep.subr.mxu0 0.0
    %2124 = vmatpush1.msra.mxu0 0.0
    %2125 = vmatprep.subr.mxu0 0.0
    %2126 = vmatpush1.msra.mxu0 0.0
    %2127 = vmatprep.subr.mxu0 0.0
    %2128 = vmatpush1.msra.mxu0 0.0
    %2129 = vmatprep.subr.mxu0 0.0
    %2130 = vmatpush1.msra.mxu0 0.0
    %2131 = vmatprep.subr.mxu0 0.0
    %2132 = vmatpush1.msra.mxu0 0.0
    %2133 = vmatprep.subr.mxu0 0.0
    %2134 = vmatpush1.msra.mxu0 0.0
    %2135 = vmatprep.subr.mxu0 0.0
    %2136 = vmatpush1.msra.mxu0 0.0
    %2137 = vmatprep.subr.mxu0 0.0
    %2138 = vmatpush1.msra.mxu0 0.0
    %2139 = vmatprep.subr.mxu0 0.0
    %2140 = vmatpush1.msra.mxu0 0.0
    %2141 = vmatprep.subr.mxu0 0.0
    %2142 = vmatpush1.msra.mxu0 0.0
    %2143 = vmatprep.subr.mxu0 0.0
    %2144 = vmatpush1.msra.mxu0 0.0
    %2145 = vmatprep.subr.mxu0 0.0
    %2146 = vmatpush1.msra.mxu0 0.0
    %2147 = vmatprep.subr.mxu0 0.0
    %2148 = vmatpush1.msra.mxu0 0.0
    %2149 = vmatprep.subr.mxu0 0.0
    %2150 = vmatpush1.msra.mxu0 0.0
    %2151 = vmatprep.subr.mxu0 0.0
    %2152 = vmatpush1.msra.mxu0 0.0
    %2153 = vmatprep.subr.mxu0 0.0
    %2154 = vmatpush1.msra.mxu0 0.0
    %2155 = vmatprep.subr.mxu0 0.0
    %2156 = vmatpush1.msra.mxu0 0.0
    %2157 = vmatprep.subr.mxu0 0.0
    %2158 = vmatpush1.msra.mxu0 0.0
    %2159 = vmatprep.subr.mxu0 0.0
    %2160 = vmatpush1.msra.mxu0 0.0
    %2161 = vmatprep.subr.mxu0 0.0
    %2162 = vmatpush1.msra.mxu0 0.0
    %2163 = vmatprep.subr.mxu0 0.0
    %2164 = vmatpush1.msra.mxu0 0.0
    %2165 = vmatprep.subr.mxu0 0.0
    %2166 = vmatpush1.msra.mxu0 0.0
    %2167 = vmatprep.subr.mxu0 0.0
    %2168 = vmatpush1.msra.mxu0 0.0
    %2169 = vmatprep.subr.mxu0 0.0
    %2170 = vmatpush1.msra.mxu0 0.0
    %2171 = vmatprep.mubr.f32.mxu0 0.0
    %2172 = vmatmul.mubr.f32.gmra.mrb[0].mxu0 %v2105
    %v2173 = vpop.f32.mrb[0].mxu0
    %v2174 = vadd.f32 0.0, %v2173
    %v2175 = vpop.f32.mrb[0].mxu0
    %2176 = vdwg.mxu0
    %v2177 = vadd.f32 %v1335, %v2174
    %v2178 = vxor.u32 %v2177, 2147483648
    %v2179 = vmul.f32 %v2178, 1.442695
    %v2180 = vpow.pop %v2179
    %v2181 = vadd.f32 %v2180, 1.0
    %v2182 = vrcp.pop %v2181
    %v2183 = vmul.f32 1.0, %v2182
    %v2184 = vtanh.pop %v2177
    %v2185 = vmul.f32 %v2183, %v2086
    %2187 = vrot.lane.b32.xlu0 %v2184, 64
    %v2188 = vpop.permute.xlu0 %2187
    %v2190 = vmul.f32 %v2183, %v2188
    %2192 = vrot.lane.b32.xlu0 %v2190, 32
    %v2193 = vpop.permute.xlu0 %2192
    %v2195 = vadd.f32 %v2185, %v2193
    %v2196 = vtanh.pop %v2195
    %2198 = vrot.lane.b32.xlu0 %v2196, 64
    %v2199 = vpop.permute.xlu0 %2198
    %v2201 = vmul.f32 %v2183, %v2199
    %v2204 = vunpack.c.l.s4 1983009808
    %v2205 = vunpack.c.0.s8 %v2204
    %v2206 = vlaneseq
    %v2207 = vshrl.u32 %v2206, 7
    %v2208 = vsub.s32 %v2205, %v2207
    %v2209 = vrot.slane %v2201, %v2208
    %2210 = vrot.lane.b32.xlu0 %v2209, 32
    %v2211 = vpop.permute.xlu0 %2210
    %2213 = vst.msk [vmem:[%s1154] sm:$0x3] %vm384, %v2211
    %v2214 = vld [vmem:[#allocation2] sm:$0x3]
    %v2215 = vld [vmem:[#allocation2 + $0x2] sm:$0x3]
    %v2216 = vld [vmem:[#allocation2 + $0x4] sm:$0x3]
    %v2217 = vld [vmem:[#allocation2 + $0x6] sm:$0x3]
    %v2218 = vld [vmem:[#allocation2 + $0x8] sm:$0x3]
    %v2219 = vld [vmem:[#allocation2 + $0xa] sm:$0x3]
    %v2220 = vld [vmem:[#allocation2 + $0xc] sm:$0x3]
    %v2221 = vld [vmem:[#allocation2 + $0xe] sm:$0x3]
    %v2222 = vld [vmem:[%s7] sm:$0xff]
    %v2223 = vld [vmem:[%s7 + $0x8] sm:$0xff]
    %v2224 = vld [vmem:[%s7 + $0x10] sm:$0xff]
    %v2225 = vld [vmem:[%s7 + $0x18] sm:$0xff]
    %v2226 = vld [vmem:[%s8] sm:$0x1]
    %v2228 = vlaneseq
    %v2229 = vshrl.u32 %v2228, 7
    %v2230 = vsub.s32 0, %v2229
    %v2231 = vrot.slane %v2226, %v2230
    %v2241 = vcombine.low %v2214, %v2215
    %v2242 = vcombine.low %v2216, %v2217
    %v2244 = vunpack.c.l.s4 1983009808
    %v2245 = vunpack.c.0.s8 %v2244
    %v2246 = vlaneseq
    %v2247 = vshrl.u32 %v2246, 7
    %v2248 = vsub.s32 %v2245, %v2247
    %v2249 = vrot.slane %v2241, %v2248
    %v2251 = vunpack.c.l.s4 1983009808
    %v2252 = vunpack.c.0.s8 %v2251
    %v2253 = vlaneseq
    %v2254 = vshrl.u32 %v2253, 7
    %v2255 = vsub.s32 %v2252, %v2254
    %v2256 = vrot.slane %v2242, %v2255
    %v2257 = vcombine.low %v2249, %v2256
    %v2258 = vcombine.low %v2218, %v2219
    %v2259 = vcombine.low %v2220, %v2221
    %v2261 = vunpack.c.l.s4 1983009808
    %v2262 = vunpack.c.0.s8 %v2261
    %v2263 = vlaneseq
    %v2264 = vshrl.u32 %v2263, 7
    %v2265 = vsub.s32 %v2262, %v2264
    %v2266 = vrot.slane %v2258, %v2265
    %v2268 = vunpack.c.l.s4 1983009808
    %v2269 = vunpack.c.0.s8 %v2268
    %v2270 = vlaneseq
    %v2271 = vshrl.u32 %v2270, 7
    %v2272 = vsub.s32 %v2269, %v2271
    %v2273 = vrot.slane %v2259, %v2272
    %v2274 = vcombine.low %v2266, %v2273
    %v2275 = vsel %vm274, %v2257, 0
    %v2277 = vsel %vm274, %v2274, 0
    %2279 = vmatprep.subr.mxu0 0.0
    %2280 = vmatpush1.msra.mxu0 %v2222
    %2281 = vmatprep.subr.mxu0 0.0
    %2282 = vmatpush1.msra.mxu0 %v2223
    %2283 = vmatprep.subr.mxu0 0.0
    %2284 = vmatpush1.msra.mxu0 %v2224
    %2285 = vmatprep.subr.mxu0 0.0
    %2286 = vmatpush1.msra.mxu0 %v2225
    %2287 = vmatprep.subr.mxu0 0.0
    %2288 = vmatpush1.msra.mxu0 0.0
    %2289 = vmatprep.subr.mxu0 0.0
    %2290 = vmatpush1.msra.mxu0 0.0
    %2291 = vmatprep.subr.mxu0 0.0
    %2292 = vmatpush1.msra.mxu0 0.0
    %2293 = vmatprep.subr.mxu0 0.0
    %2294 = vmatpush1.msra.mxu0 0.0
    %2295 = vmatprep.subr.mxu0 0.0
    %2296 = vmatpush1.msra.mxu0 0.0
    %2297 = vmatprep.subr.mxu0 0.0
    %2298 = vmatpush1.msra.mxu0 0.0
    %2299 = vmatprep.subr.mxu0 0.0
    %2300 = vmatpush1.msra.mxu0 0.0
    %2301 = vmatprep.subr.mxu0 0.0
    %2302 = vmatpush1.msra.mxu0 0.0
    %2303 = vmatprep.subr.mxu0 0.0
    %2304 = vmatpush1.msra.mxu0 0.0
    %2305 = vmatprep.subr.mxu0 0.0
    %2306 = vmatpush1.msra.mxu0 0.0
    %2307 = vmatprep.subr.mxu0 0.0
    %2308 = vmatpush1.msra.mxu0 0.0
    %2309 = vmatprep.subr.mxu0 0.0
    %2310 = vmatpush1.msra.mxu0 0.0
    %2311 = vmatprep.subr.mxu0 0.0
    %2312 = vmatpush1.msra.mxu0 0.0
    %2313 = vmatprep.subr.mxu0 0.0
    %2314 = vmatpush1.msra.mxu0 0.0
    %2315 = vmatprep.subr.mxu0 0.0
    %2316 = vmatpush1.msra.mxu0 0.0
    %2317 = vmatprep.subr.mxu0 0.0
    %2318 = vmatpush1.msra.mxu0 0.0
    %2319 = vmatprep.subr.mxu0 0.0
    %2320 = vmatpush1.msra.mxu0 0.0
    %2321 = vmatprep.subr.mxu0 0.0
    %2322 = vmatpush1.msra.mxu0 0.0
    %2323 = vmatprep.subr.mxu0 0.0
    %2324 = vmatpush1.msra.mxu0 0.0
    %2325 = vmatprep.subr.mxu0 0.0
    %2326 = vmatpush1.msra.mxu0 0.0
    %2327 = vmatprep.subr.mxu0 0.0
    %2328 = vmatpush1.msra.mxu0 0.0
    %2329 = vmatprep.subr.mxu0 0.0
    %2330 = vmatpush1.msra.mxu0 0.0
    %2331 = vmatprep.subr.mxu0 0.0
    %2332 = vmatpush1.msra.mxu0 0.0
    %2333 = vmatprep.subr.mxu0 0.0
    %2334 = vmatpush1.msra.mxu0 0.0
    %2335 = vmatprep.subr.mxu0 0.0
    %2336 = vmatpush1.msra.mxu0 0.0
    %2337 = vmatprep.subr.mxu0 0.0
    %2338 = vmatpush1.msra.mxu0 0.0
    %2339 = vmatprep.subr.mxu0 0.0
    %2340 = vmatpush1.msra.mxu0 0.0
    %2341 = vmatprep.subr.mxu0 0.0
    %2342 = vmatpush1.msra.mxu0 0.0
    %2343 = vmatprep.mubr.f32.mxu0 0.0
    %2344 = vmatmul.mubr.f32.gmra.mrb[0].mxu0 %v2275
    %v2345 = vpop.f32.mrb[0].mxu0
    %v2346 = vadd.f32 %v2231, %v2345
    %v2347 = vpop.f32.mrb[0].mxu0
    %2348 = vmatprep.mubr.f32.mxu0 0.0
    %2349 = vmatmul.mubr.f32.gmra.mrb[0].mxu0 %v2277
    %v2350 = vpop.f32.mrb[0].mxu0
    %v2351 = vadd.f32 %v2231, %v2350
    %v2352 = vpop.f32.mrb[0].mxu0
    %2353 = vdwg.mxu0
    %vm2354 = vcmask 64512
    %2355 = vst.msk [vmem:[%s9] sm:$0xff] %vm2354, %v2346
    %2356 = vst.msk [vmem:[%s9 + $0x8] sm:$0xff] %vm2354, %v2351
    // Predicated region
    $region54: #{tpu_custom_call.1} parent=1 // pred_check
      _
    $region55: #{tpu_custom_call.1} parent=1 // pred_check_branch
      %2358 = sbr.rel (0) target = $region57
    $region56: #{tpu_custom_call.1} parent=1 // pred_region
      _
    $region57: #{tpu_custom_call.1} parent=1 // pred_fallthru
      _
    // Predicated region
    $region58: #{tpu_custom_call.1} parent=1 // pred_check
      _
    $region59: #{tpu_custom_call.1} parent=1 // pred_check_branch
      %2360 = sbr.rel (0) target = $region61
    $region60: #{tpu_custom_call.1} parent=1 // pred_region
      _
    $region61: #{tpu_custom_call.1} parent=1 // pred_fallthru
      _
    %2361 = vsyncpa [#allocation4], 1
    %2362 = vsyncpa [#allocation6], 1
    %2363 = vsyncpa [#allocation9], 1

</llo_original>
